<compile_context>
chip_gen: v7x
topology: tpu7x:2x2x1
jax: 0.10.0
libtpu: 0.0.40
codegen_flags: <defaults>
</compile_context>

<pallas_src>
import jax
import jax.numpy as jnp
from jax.experimental import pallas as pl
from jax.experimental.pallas import tpu as pltpu


def _round_up(x, m):
    return (x + m - 1) // m * m


# ---------------------------------------------------------------------------
# Kernel 1: direct stride-1 conv ("wide" layout) + fused BN partial stats
# ---------------------------------------------------------------------------
def _make_conv_kernel(offsets, t_hw, halo, n_hw, stream_x):
    def kernel(x_ref, w_ref, mask_ref, o_ref, psum_ref, psq_ref):
        # x_ref   : (1, Cin_p, flat_len) resident per batch  (stream_x=False)
        #           (1, Cin_p, t_hw)     streamed per tile   (stream_x=True)
        # w_ref   : (KK, Cout_p, Cin_p)  fully VMEM-resident bf16 weights
        # mask_ref: (1, t_hw)            1.0 on valid output positions
        # o_ref   : (1, Cout_p, t_hw)    bf16 conv tile (lane-dense)
        # psum/psq: (1, 1, Cout_p, 1)    f32 per-(batch, tile) partial stats
        if stream_x or n_hw == 1:
            win = x_ref[0]
        else:
            base = pl.multiple_of(pl.program_id(1) * t_hw, 128)
            win = x_ref[0, :, pl.ds(base, t_hw + halo)]

        acc = None  # f32 accumulator lives in vregs/VMEM, written once
        for idx, off in enumerate(offsets):      # static KH*KW loop
            part = jnp.dot(w_ref[idx], win[:, off:off + t_hw],
                           preferred_element_type=jnp.float32)
            acc = part if acc is None else acc + part

        o_ref[0] = acc.astype(o_ref.dtype)       # bf16 intermediate

        masked = acc * mask_ref[...]             # zero out garbage/pad lanes
        psum_ref[0, 0] = jnp.sum(masked, axis=1, keepdims=True)
        psq_ref[0, 0] = jnp.sum(masked * masked, axis=1, keepdims=True)

    return kernel


# ---------------------------------------------------------------------------
# Kernel 2: fused BN normalize + ReLU (streaming, lane-dense)
# ---------------------------------------------------------------------------
def _bn_relu_kernel(x_ref, scale_ref, bias_ref, o_ref):
    # x_ref: (1, Cout_p, T) bf16; scale/bias: (Cout_p, 1) f32; o_ref f32
    y = x_ref[0].astype(jnp.float32) * scale_ref[...] + bias_ref[...]
    o_ref[0] = jnp.maximum(y, 0.0)


# ---------------------------------------------------------------------------
# Core: stride-1 direct conv over a spatially pre-padded NCHW (bf16) input
# ---------------------------------------------------------------------------
def _conv_core(xp, w_oikk, dil, *, vmem_budget=36 << 20, vmem_limit=48 << 20):
    n, c_in, h_p, w_p = xp.shape
    c_out, _, kh, kw = w_oikk.shape
    h_out = h_p - dil * (kh - 1)
    w_out = w_p - dil * (kw - 1)
    kk = kh * kw
    hw_wide = h_out * w_p                       # wide flattened output length
    c_in_p = _round_up(c_in, 16)                # bf16 sublane packing
    c_pad = _round_up(c_out, 16)
    offsets = [i * dil * w_p + j * dil for i in range(kh) for j in range(kw)]
    max_off = offsets[-1]
    stream_x = (kk == 1)                        # no halo -> plain blocked tiling
    halo = 0 if stream_x else _round_up(max_off, 128)

    # ---- tile size for the wide flattened (lane) axis, VMEM-budget derived --
    def _ws_bytes(t):
        hwp = _round_up(hw_wide, t)
        out_tile = 2 * (2 * c_pad * t)                       # bf16 out, 2 bufs
        acc = 4 * c_pad * t                                  # f32 accumulator
        win = 2 * c_in_p * (t + halo) * max(kk, 1)           # sliced windows
        x_in = (2 * (2 * c_in_p * t) if stream_x
                else 2 * (2 * c_in_p * (hwp + halo)))        # streamed / resident
        w_b = 2 * (2 * kk * c_pad * c_in_p)
        return out_tile + acc + win + x_in + w_b

    t_hw = 128
    for t in (4096, 2048, 1024, 512, 256, 128):
        if _ws_bytes(t) <= vmem_budget:
            t_hw = t
            break
    t_hw = min(t_hw, _round_up(hw_wide, 128))
    hw_wide_pad = _round_up(hw_wide, t_hw)
    n_hw = hw_wide_pad // t_hw
    flat_len = hw_wide_pad if stream_x else hw_wide_pad + halo

    # ---- operand prep (bf16 MXU operands, f32 accumulation in-kernel) -------
    x_flat = xp.astype(jnp.bfloat16).reshape(n, c_in, h_p * w_p)
    x_flat = jnp.pad(
        x_flat, ((0, 0), (0, c_in_p - c_in), (0, flat_len - h_p * w_p)))
    w_mat = (w_oikk.astype(jnp.bfloat16)
             .transpose(2, 3, 0, 1).reshape(kk, c_out, c_in))
    w_mat = jnp.pad(w_mat, ((0, 0), (0, c_pad - c_out), (0, c_in_p - c_in)))
    pos = jnp.arange(hw_wide_pad, dtype=jnp.int32)
    mask = ((pos % w_p) < w_out) & (pos < hw_wide)
    mask = mask.astype(jnp.float32).reshape(1, hw_wide_pad)

    if stream_x:
        x_spec = pl.BlockSpec((1, c_in_p, t_hw), lambda b, m: (b, 0, m))
    else:
        # Constant index over the tile axis: each padded sample is DMA'd to
        # VMEM once and stays resident while all of its tiles are computed.
        x_spec = pl.BlockSpec((1, c_in_p, flat_len), lambda b, m: (b, 0, 0))

    kernel = _make_conv_kernel(tuple(offsets), t_hw, halo, n_hw, stream_x)

    wide, psum, psq = pl.pallas_call(
        kernel,
        out_shape=(
            jax.ShapeDtypeStruct((n, c_pad, hw_wide_pad), jnp.bfloat16),
            jax.ShapeDtypeStruct((n, n_hw, c_pad, 1), jnp.float32),
            jax.ShapeDtypeStruct((n, n_hw, c_pad, 1), jnp.float32),
        ),
        grid=(n, n_hw),
        in_specs=[
            x_spec,
            pl.BlockSpec((kk, c_pad, c_in_p), lambda b, m: (0, 0, 0)),  # resident
            pl.BlockSpec((1, t_hw), lambda b, m: (0, m)),
        ],
        out_specs=(
            pl.BlockSpec((1, c_pad, t_hw), lambda b, m: (b, 0, m)),
            pl.BlockSpec((1, 1, c_pad, 1), lambda b, m: (b, m, 0, 0)),
            pl.BlockSpec((1, 1, c_pad, 1), lambda b, m: (b, m, 0, 0)),
        ),
        compiler_params=pltpu.CompilerParams(
            dimension_semantics=("parallel", "parallel"),
            vmem_limit_bytes=vmem_limit,
        ),
        cost_estimate=pl.CostEstimate(
            flops=2 * n * hw_wide_pad * kk * c_in_p * c_pad,
            transcendentals=0,
            bytes_accessed=(x_flat.size * 2 + w_mat.size * 2
                            + n * c_pad * hw_wide_pad * 2),
        ),
    )(x_flat, w_mat, mask)

    meta = dict(h_out=h_out, w_out=w_out, w_p=w_p, hw_wide=hw_wide,
                hw_wide_pad=hw_wide_pad, c_pad=c_pad, t_hw=t_hw, n_hw=n_hw)
    return wide, psum, psq, meta


# ---------------------------------------------------------------------------
# Fallback im2col (wrapper-side, bf16) for stride > 1 / oversized samples
# ---------------------------------------------------------------------------
def _im2col(x_nchw, kh, kw, stride, padding, dilation):
    n, c, h, w = x_nchw.shape
    xp = jnp.pad(x_nchw, ((0, 0), (0, 0), (padding, padding), (padding, padding)))
    h_out = (h + 2 * padding - dilation * (kh - 1) - 1) // stride + 1
    w_out = (w + 2 * padding - dilation * (kw - 1) - 1) // stride + 1
    cols = []
    for i in range(kh):
        for j in range(kw):
            hi, wj = i * dilation, j * dilation
            cols.append(xp[:, :, hi:hi + stride * (h_out - 1) + 1:stride,
                               wj:wj + stride * (w_out - 1) + 1:stride])
    cols = jnp.stack(cols, axis=2)            # (N, C, KK, H_out, W_out)
    return cols.reshape(n, c * kh * kw, h_out, w_out), h_out, w_out


# ---------------------------------------------------------------------------
# ConvBNReLU forward
# ---------------------------------------------------------------------------
def conv_bn_relu(x, weight, gamma, beta, *, stride, padding, dilation, eps=1e-5):
    """x: (N, Cin, H, W); weight: (Cout, Cin, KH, KW) -- PyTorch OIHW."""
    n, c_in, h, w = x.shape
    c_out, _, kh, kw = weight.shape
    xb = x.astype(jnp.bfloat16)

    fused = (stride == 1)
    if fused:
        h_p, w_p = h + 2 * padding, w + 2 * padding
        # whole padded sample (bf16, double-buffered) must fit the VMEM budget
        fused = 4 * _round_up(c_in, 16) * h_p * w_p <= (24 << 20)

    if fused:
        xp = jnp.pad(xb, ((0, 0), (0, 0), (padding, padding), (padding, padding)))
        wide, psum, psq, meta = _conv_core(xp, weight, dilation)
    else:
        # TODO(synk): fold stride>1 directly into the Pallas kernel; this path
        # pays the KH*KW x input-read amplification of a wrapper-side im2col.
        cols, h_out, w_out = _im2col(xb, kh, kw, stride, padding, dilation)
        wide, psum, psq, meta = _conv_core(
            cols, weight.reshape(c_out, c_in * kh * kw, 1, 1), 1)

    c_pad = meta["c_pad"]
    count = float(n * meta["h_out"] * meta["w_out"])
    tot = jnp.sum(psum, axis=(0, 1))            # (c_pad, 1)
    tot_sq = jnp.sum(psq, axis=(0, 1))          # (c_pad, 1)
    mean = tot / count
    var = jnp.maximum(tot_sq / count - mean * mean, 0.0)   # biased (training BN)

    gamma_p = jnp.pad(gamma.astype(jnp.float32), (0, c_pad - c_out)).reshape(c_pad, 1)
    beta_p = jnp.pad(beta.astype(jnp.float32), (0, c_pad - c_out)).reshape(c_pad, 1)
    scale = gamma_p * jax.lax.rsqrt(var + eps)
    bias = beta_p - mean * scale

    hw_wide_pad = meta["hw_wide_pad"]
    if c_pad * hw_wide_pad * 12 <= (24 << 20):      # whole-sample slab per step
        t_bn, n_bn = hw_wide_pad, 1
    else:
        t_bn, n_bn = meta["t_hw"], meta["n_hw"]

    y = pl.pallas_call(
        _bn_relu_kernel,
        out_shape=jax.ShapeDtypeStruct((n, c_pad, hw_wide_pad), jnp.float32),
        grid=(n, n_bn),
        in_specs=[
            pl.BlockSpec((1, c_pad, t_bn), lambda b, m: (b, 0, m)),
            pl.BlockSpec((c_pad, 1), lambda b, m: (0, 0)),
            pl.BlockSpec((c_pad, 1), lambda b, m: (0, 0)),
        ],
        out_specs=pl.BlockSpec((1, c_pad, t_bn), lambda b, m: (b, 0, m)),
        compiler_params=pltpu.CompilerParams(
            dimension_semantics=("parallel", "parallel"),
            vmem_limit_bytes=48 << 20,
        ),
    )(wide, scale, bias)

    # Channel-major wide layout: final NCHW is a pure slice + reshape.
    h_out, w_out, w_p = meta["h_out"], meta["w_out"], meta["w_p"]
    out = y[:, :c_out, :meta["hw_wide"]].reshape(n, c_out, h_out, w_p)
    return out[:, :, :, :w_out]


# ---------------------------------------------------------------------------
# Pure-JAX reference for self-check
# ---------------------------------------------------------------------------
def _ref_conv_bn_relu(x, w, gamma, beta, *, stride, padding, dilation, eps,
                      quantize):
    if quantize:  # mimic the kernel's bf16 MXU operands + bf16 intermediate
        x = x.astype(jnp.bfloat16).astype(jnp.float32)
        w = w.astype(jnp.bfloat16).astype(jnp.float32)
    conv = jax.lax.conv_general_dilated(
        x, w, window_strides=(stride, stride),
        padding=[(padding, padding), (padding, padding)],
        rhs_dilation=(dilation, dilation),
        dimension_numbers=("NCHW", "OIHW", "NCHW"))
    mean = jnp.mean(conv, axis=(0, 2, 3), keepdims=True)
    var = jnp.mean(jnp.square(conv - mean), axis=(0, 2, 3), keepdims=True)
    if quantize:
        conv = conv.astype(jnp.bfloat16).astype(jnp.float32)
    scale = gamma.reshape(1, -1, 1, 1) * jax.lax.rsqrt(var + eps)
    bias = beta.reshape(1, -1, 1, 1) - mean * scale
    return jnp.maximum(conv * scale + bias, 0.0)


# ---------------------------------------------------------------------------
if __name__ == "__main__":
    key = jax.random.PRNGKey(0)
    k_x, k_w, k_g, k_b = jax.random.split(key, 4)

    # ConvBNReLU(c_in=4, c_out=8, kernel_size=3, stride=1, padding=1, dilation=1)
    N, C_IN, C_OUT, H, W = 2, 4, 8, 16, 16
    KH = KW = 3
    STRIDE, PADDING, DILATION = 1, 1, 1
    EPS = 1e-5

    x = jax.random.normal(k_x, (N, C_IN, H, W), dtype=jnp.float32)
    weight = jax.random.normal(k_w, (C_OUT, C_IN, KH, KW), dtype=jnp.float32) * 0.1
    gamma = 1.0 + 0.1 * jax.random.normal(k_g, (C_OUT,), dtype=jnp.float32)
    beta = 0.1 * jax.random.normal(k_b, (C_OUT,), dtype=jnp.float32)

    out = conv_bn_relu(x, weight, gamma, beta,
                       stride=STRIDE, padding=PADDING, dilation=DILATION, eps=EPS)
    out = jax.block_until_ready(out)
    assert out.shape == (N, C_OUT, H, W), out.shape

    # Check vs. a reference that applies the same bf16 quantization points.
    ref_q = _ref_conv_bn_relu(x, weight, gamma, beta, stride=STRIDE,
                              padding=PADDING, dilation=DILATION, eps=EPS,
                              quantize=True)
    err_q = float(jnp.max(jnp.abs(out - ref_q)))
    assert err_q < 2.5e-2, err_q

    # Loose sanity check vs. the full-f32 semantics of the original module.
    ref_f = _ref_conv_bn_relu(x, weight, gamma, beta, stride=STRIDE,
                              padding=PADDING, dilation=DILATION, eps=EPS,
                              quantize=False)
    err_f = float(jnp.max(jnp.abs(out - ref_f)))
    assert err_f < 6e-2, err_f

    print("KERNEL_OK")
</pallas_src>

<mosaic_0001>
module attributes {stable_mosaic.version = 11 : i64} {
  func.func @kernel(%arg0: i32, %arg1: i32, %arg2: memref<1x16x512xbf16, #tpu.memory_space<vmem>>, %arg3: memref<9x16x16xbf16, #tpu.memory_space<vmem>>, %arg4: memref<1x384xf32, #tpu.memory_space<vmem>>, %arg5: memref<1x16x384xbf16, #tpu.memory_space<vmem>>, %arg6: memref<1x1x16x1xf32, #tpu.memory_space<vmem>>, %arg7: memref<1x1x16x1xf32, #tpu.memory_space<vmem>>) attributes {dimension_semantics = [#tpu.dimension_semantics<parallel>, #tpu.dimension_semantics<parallel>], iteration_bounds = array<i64: 2, 1>, scalar_prefetch = 0 : i64, scratch_operands = 0 : i64, tpu.core_type = #tpu.core_type<tc>, window_params = [{transform_indices = @transform_0, window_bounds = array<i64: 1, 16, 512>}, {pipeline_mode = #tpu.pipeline_mode<synchronous>, transform_indices = @transform_1, window_bounds = array<i64: 9, 16, 16>}, {transform_indices = @transform_2, window_bounds = array<i64: 1, 384>}, {transform_indices = @transform_3, window_bounds = array<i64: 1, 16, 384>}, {transform_indices = @transform_4, window_bounds = array<i64: 1, 1, 16, 1>}, {transform_indices = @transform_5, window_bounds = array<i64: 1, 1, 16, 1>}]} {
    %c0 = arith.constant 0 : index
    %c0_0 = arith.constant 0 : index
    %c0_1 = arith.constant 0 : index
    %0 = vector.load %arg2[%c0, %c0_0, %c0_1] : memref<1x16x512xbf16, #tpu.memory_space<vmem>>, vector<1x16x512xbf16>
    %1 = vector.shape_cast %0 : vector<1x16x512xbf16> to vector<16x512xbf16>
    %c0_2 = arith.constant 0 : index
    %c0_3 = arith.constant 0 : index
    %c0_4 = arith.constant 0 : index
    %2 = vector.load %arg3[%c0_2, %c0_3, %c0_4] : memref<9x16x16xbf16, #tpu.memory_space<vmem>>, vector<1x16x16xbf16>
    %3 = vector.shape_cast %2 : vector<1x16x16xbf16> to vector<16x16xbf16>
    %4 = vector.extract_strided_slice %1 {offsets = [0, 0], sizes = [16, 384], strides = [1, 1]} : vector<16x512xbf16> to vector<16x384xbf16>
    %cst = arith.constant dense<0.000000e+00> : vector<16x384xf32>
    %5 = tpu.matmul %3, %4, %cst {dimension_numbers = #tpu.dot_dimension_numbers<[1], [0], [0], [1], [0, 0, 1, 1], [], []>} : vector<16x16xbf16>, vector<16x384xbf16>, vector<16x384xf32> -> vector<16x384xf32>
    %c1 = arith.constant 1 : index
    %c0_5 = arith.constant 0 : index
    %c0_6 = arith.constant 0 : index
    %6 = vector.load %arg3[%c1, %c0_5, %c0_6] : memref<9x16x16xbf16, #tpu.memory_space<vmem>>, vector<1x16x16xbf16>
    %7 = vector.shape_cast %6 : vector<1x16x16xbf16> to vector<16x16xbf16>
    %8 = vector.extract_strided_slice %1 {offsets = [0, 1], sizes = [16, 384], strides = [1, 1]} : vector<16x512xbf16> to vector<16x384xbf16>
    %cst_7 = arith.constant dense<0.000000e+00> : vector<16x384xf32>
    %9 = tpu.matmul %7, %8, %cst_7 {dimension_numbers = #tpu.dot_dimension_numbers<[1], [0], [0], [1], [0, 0, 1, 1], [], []>} : vector<16x16xbf16>, vector<16x384xbf16>, vector<16x384xf32> -> vector<16x384xf32>
    %10 = arith.addf %5, %9 : vector<16x384xf32>
    %c2 = arith.constant 2 : index
    %c0_8 = arith.constant 0 : index
    %c0_9 = arith.constant 0 : index
    %11 = vector.load %arg3[%c2, %c0_8, %c0_9] : memref<9x16x16xbf16, #tpu.memory_space<vmem>>, vector<1x16x16xbf16>
    %12 = vector.shape_cast %11 : vector<1x16x16xbf16> to vector<16x16xbf16>
    %13 = vector.extract_strided_slice %1 {offsets = [0, 2], sizes = [16, 384], strides = [1, 1]} : vector<16x512xbf16> to vector<16x384xbf16>
    %cst_10 = arith.constant dense<0.000000e+00> : vector<16x384xf32>
    %14 = tpu.matmul %12, %13, %cst_10 {dimension_numbers = #tpu.dot_dimension_numbers<[1], [0], [0], [1], [0, 0, 1, 1], [], []>} : vector<16x16xbf16>, vector<16x384xbf16>, vector<16x384xf32> -> vector<16x384xf32>
    %15 = arith.addf %10, %14 : vector<16x384xf32>
    %c3 = arith.constant 3 : index
    %c0_11 = arith.constant 0 : index
    %c0_12 = arith.constant 0 : index
    %16 = vector.load %arg3[%c3, %c0_11, %c0_12] : memref<9x16x16xbf16, #tpu.memory_space<vmem>>, vector<1x16x16xbf16>
    %17 = vector.shape_cast %16 : vector<1x16x16xbf16> to vector<16x16xbf16>
    %18 = vector.extract_strided_slice %1 {offsets = [0, 18], sizes = [16, 384], strides = [1, 1]} : vector<16x512xbf16> to vector<16x384xbf16>
    %cst_13 = arith.constant dense<0.000000e+00> : vector<16x384xf32>
    %19 = tpu.matmul %17, %18, %cst_13 {dimension_numbers = #tpu.dot_dimension_numbers<[1], [0], [0], [1], [0, 0, 1, 1], [], []>} : vector<16x16xbf16>, vector<16x384xbf16>, vector<16x384xf32> -> vector<16x384xf32>
    %20 = arith.addf %15, %19 : vector<16x384xf32>
    %c4 = arith.constant 4 : index
    %c0_14 = arith.constant 0 : index
    %c0_15 = arith.constant 0 : index
    %21 = vector.load %arg3[%c4, %c0_14, %c0_15] : memref<9x16x16xbf16, #tpu.memory_space<vmem>>, vector<1x16x16xbf16>
    %22 = vector.shape_cast %21 : vector<1x16x16xbf16> to vector<16x16xbf16>
    %23 = vector.extract_strided_slice %1 {offsets = [0, 19], sizes = [16, 384], strides = [1, 1]} : vector<16x512xbf16> to vector<16x384xbf16>
    %cst_16 = arith.constant dense<0.000000e+00> : vector<16x384xf32>
    %24 = tpu.matmul %22, %23, %cst_16 {dimension_numbers = #tpu.dot_dimension_numbers<[1], [0], [0], [1], [0, 0, 1, 1], [], []>} : vector<16x16xbf16>, vector<16x384xbf16>, vector<16x384xf32> -> vector<16x384xf32>
    %25 = arith.addf %20, %24 : vector<16x384xf32>
    %c5 = arith.constant 5 : index
    %c0_17 = arith.constant 0 : index
    %c0_18 = arith.constant 0 : index
    %26 = vector.load %arg3[%c5, %c0_17, %c0_18] : memref<9x16x16xbf16, #tpu.memory_space<vmem>>, vector<1x16x16xbf16>
    %27 = vector.shape_cast %26 : vector<1x16x16xbf16> to vector<16x16xbf16>
    %28 = vector.extract_strided_slice %1 {offsets = [0, 20], sizes = [16, 384], strides = [1, 1]} : vector<16x512xbf16> to vector<16x384xbf16>
    %cst_19 = arith.constant dense<0.000000e+00> : vector<16x384xf32>
    %29 = tpu.matmul %27, %28, %cst_19 {dimension_numbers = #tpu.dot_dimension_numbers<[1], [0], [0], [1], [0, 0, 1, 1], [], []>} : vector<16x16xbf16>, vector<16x384xbf16>, vector<16x384xf32> -> vector<16x384xf32>
    %30 = arith.addf %25, %29 : vector<16x384xf32>
    %c6 = arith.constant 6 : index
    %c0_20 = arith.constant 0 : index
    %c0_21 = arith.constant 0 : index
    %31 = vector.load %arg3[%c6, %c0_20, %c0_21] : memref<9x16x16xbf16, #tpu.memory_space<vmem>>, vector<1x16x16xbf16>
    %32 = vector.shape_cast %31 : vector<1x16x16xbf16> to vector<16x16xbf16>
    %33 = vector.extract_strided_slice %1 {offsets = [0, 36], sizes = [16, 384], strides = [1, 1]} : vector<16x512xbf16> to vector<16x384xbf16>
    %cst_22 = arith.constant dense<0.000000e+00> : vector<16x384xf32>
    %34 = tpu.matmul %32, %33, %cst_22 {dimension_numbers = #tpu.dot_dimension_numbers<[1], [0], [0], [1], [0, 0, 1, 1], [], []>} : vector<16x16xbf16>, vector<16x384xbf16>, vector<16x384xf32> -> vector<16x384xf32>
    %35 = arith.addf %30, %34 : vector<16x384xf32>
    %c7 = arith.constant 7 : index
    %c0_23 = arith.constant 0 : index
    %c0_24 = arith.constant 0 : index
    %36 = vector.load %arg3[%c7, %c0_23, %c0_24] : memref<9x16x16xbf16, #tpu.memory_space<vmem>>, vector<1x16x16xbf16>
    %37 = vector.shape_cast %36 : vector<1x16x16xbf16> to vector<16x16xbf16>
    %38 = vector.extract_strided_slice %1 {offsets = [0, 37], sizes = [16, 384], strides = [1, 1]} : vector<16x512xbf16> to vector<16x384xbf16>
    %cst_25 = arith.constant dense<0.000000e+00> : vector<16x384xf32>
    %39 = tpu.matmul %37, %38, %cst_25 {dimension_numbers = #tpu.dot_dimension_numbers<[1], [0], [0], [1], [0, 0, 1, 1], [], []>} : vector<16x16xbf16>, vector<16x384xbf16>, vector<16x384xf32> -> vector<16x384xf32>
    %40 = arith.addf %35, %39 : vector<16x384xf32>
    %c8 = arith.constant 8 : index
    %c0_26 = arith.constant 0 : index
    %c0_27 = arith.constant 0 : index
    %41 = vector.load %arg3[%c8, %c0_26, %c0_27] : memref<9x16x16xbf16, #tpu.memory_space<vmem>>, vector<1x16x16xbf16>
    %42 = vector.shape_cast %41 : vector<1x16x16xbf16> to vector<16x16xbf16>
    %43 = vector.extract_strided_slice %1 {offsets = [0, 38], sizes = [16, 384], strides = [1, 1]} : vector<16x512xbf16> to vector<16x384xbf16>
    %cst_28 = arith.constant dense<0.000000e+00> : vector<16x384xf32>
    %44 = tpu.matmul %42, %43, %cst_28 {dimension_numbers = #tpu.dot_dimension_numbers<[1], [0], [0], [1], [0, 0, 1, 1], [], []>} : vector<16x16xbf16>, vector<16x384xbf16>, vector<16x384xf32> -> vector<16x384xf32>
    %45 = arith.addf %40, %44 : vector<16x384xf32>
    %46 = arith.truncf %45 : vector<16x384xf32> to vector<16x384xbf16>
    %c0_29 = arith.constant 0 : index
    %c0_30 = arith.constant 0 : index
    %c0_31 = arith.constant 0 : index
    %47 = vector.load %arg5[%c0_29, %c0_30, %c0_31] : memref<1x16x384xbf16, #tpu.memory_space<vmem>>, vector<1x16x384xbf16>
    %48 = vector.shape_cast %47 : vector<1x16x384xbf16> to vector<16x384xbf16>
    %49 = vector.shape_cast %46 : vector<16x384xbf16> to vector<1x16x384xbf16>
    tpu.vector_store %arg5[%c0_29, %c0_30, %c0_31], %49 {strides = array<i32>} : memref<1x16x384xbf16, #tpu.memory_space<vmem>>, vector<1x16x384xbf16>,
    %c0_32 = arith.constant 0 : index
    %c0_33 = arith.constant 0 : index
    %50 = vector.load %arg4[%c0_32, %c0_33] : memref<1x384xf32, #tpu.memory_space<vmem>>, vector<1x384xf32>
    %51 = vector.broadcast %50 : vector<1x384xf32> to vector<16x384xf32>
    %52 = arith.mulf %45, %51 : vector<16x384xf32>
    %cst_34 = arith.constant dense<0.000000e+00> : vector<16xf32>
    %53 = vector.multi_reduction <add>, %52, %cst_34 [1] : vector<16x384xf32> to vector<16xf32>
    %54 = vector.shape_cast %53 : vector<16xf32> to vector<16x1xf32>
    %c0_35 = arith.constant 0 : index
    %c0_36 = arith.constant 0 : index
    %c0_37 = arith.constant 0 : index
    %c0_38 = arith.constant 0 : index
    %55 = vector.load %arg6[%c0_35, %c0_36, %c0_37, %c0_38] : memref<1x1x16x1xf32, #tpu.memory_space<vmem>>, vector<1x1x16x1xf32>
    %56 = vector.shape_cast %55 : vector<1x1x16x1xf32> to vector<16x1xf32>
    %57 = vector.shape_cast %54 : vector<16x1xf32> to vector<1x1x16x1xf32>
    tpu.vector_store %arg6[%c0_35, %c0_36, %c0_37, %c0_38], %57 {strides = array<i32>} : memref<1x1x16x1xf32, #tpu.memory_space<vmem>>, vector<1x1x16x1xf32>,
    %58 = arith.mulf %52, %52 : vector<16x384xf32>
    %cst_39 = arith.constant dense<0.000000e+00> : vector<16xf32>
    %59 = vector.multi_reduction <add>, %58, %cst_39 [1] : vector<16x384xf32> to vector<16xf32>
    %60 = vector.shape_cast %59 : vector<16xf32> to vector<16x1xf32>
    %c0_40 = arith.constant 0 : index
    %c0_41 = arith.constant 0 : index
    %c0_42 = arith.constant 0 : index
    %c0_43 = arith.constant 0 : index
    %61 = vector.load %arg7[%c0_40, %c0_41, %c0_42, %c0_43] : memref<1x1x16x1xf32, #tpu.memory_space<vmem>>, vector<1x1x16x1xf32>
    %62 = vector.shape_cast %61 : vector<1x1x16x1xf32> to vector<16x1xf32>
    %63 = vector.shape_cast %60 : vector<16x1xf32> to vector<1x1x16x1xf32>
    tpu.vector_store %arg7[%c0_40, %c0_41, %c0_42, %c0_43], %63 {strides = array<i32>} : memref<1x1x16x1xf32, #tpu.memory_space<vmem>>, vector<1x1x16x1xf32>,
    return
  }
  func.func @transform_0(%arg0: i32, %arg1: i32) -> (i32, i32, i32) {
    %c0_i32 = arith.constant 0 : i32
    %c0_i32_0 = arith.constant 0 : i32
    %c0_i32_1 = arith.constant 0 : i32
    return %arg0, %c0_i32, %c0_i32_0 : i32, i32, i32
  }
  func.func @transform_1(%arg0: i32, %arg1: i32) -> (i32, i32, i32) {
    %c0_i32 = arith.constant 0 : i32
    %c0_i32_0 = arith.constant 0 : i32
    %c0_i32_1 = arith.constant 0 : i32
    %c0_i32_2 = arith.constant 0 : i32
    return %c0_i32, %c0_i32_0, %c0_i32_1 : i32, i32, i32
  }
  func.func @transform_2(%arg0: i32, %arg1: i32) -> (i32, i32) {
    %c0_i32 = arith.constant 0 : i32
    %c0_i32_0 = arith.constant 0 : i32
    return %c0_i32, %arg1 : i32, i32
  }
  func.func @transform_3(%arg0: i32, %arg1: i32) -> (i32, i32, i32) {
    %c0_i32 = arith.constant 0 : i32
    %c0_i32_0 = arith.constant 0 : i32
    return %arg0, %c0_i32, %arg1 : i32, i32, i32
  }
  func.func @transform_4(%arg0: i32, %arg1: i32) -> (i32, i32, i32, i32) {
    %c0_i32 = arith.constant 0 : i32
    %c0_i32_0 = arith.constant 0 : i32
    %c0_i32_1 = arith.constant 0 : i32
    return %arg0, %arg1, %c0_i32, %c0_i32_0 : i32, i32, i32, i32
  }
  func.func @transform_5(%arg0: i32, %arg1: i32) -> (i32, i32, i32, i32) {
    %c0_i32 = arith.constant 0 : i32
    %c0_i32_0 = arith.constant 0 : i32
    %c0_i32_1 = arith.constant 0 : i32
    return %arg0, %arg1, %c0_i32, %c0_i32_0 : i32, i32, i32, i32
  }
}

</mosaic_0001>

<llo_original>
// kernel: tpu_custom_call.1
$region0: #{tpu_custom_call.1}
  #allocation0 [shape = 'u32[]', space=smem, size = 0x4, offset = 0x4, fixed_abs, tag = 'smem constant byte address 0x4 - core index']
  #allocation1 [shape = 'u32[144,128]{1,0:T(1,128)}', space=vmem, size = 0x12000, scoped, tag = 'internal scratch']
  %s0 = inlined_call_operand.hbm [shape: bf16[2,16,512], index: 0, kind: input, shape index: {}]
  %s1 = inlined_call_operand.hbm [shape: bf16[9,16,16], index: 1, kind: input, shape index: {}]
  %s2 = inlined_call_operand.vmem [shape: f32[1,384], index: 2, kind: input, shape index: {}]
  %s3 = inlined_call_operand.hbm [shape: bf16[2,16,384], index: 3, kind: output, shape index: {0}]
  %s4 = inlined_call_operand.vmem [shape: f32[2,1,16,1], index: 4, kind: output, shape index: {1}]
  %s5 = inlined_call_operand.vmem [shape: f32[2,1,16,1], index: 5, kind: output, shape index: {2}]
  %6 = xla_tuple %s3, %s4, %s5
  %s7 = sld [smem:[#allocation0]]
  $region69: #{tpu_custom_call.1} parent=0
    _
  %s9 = ssub.s32 1, %s7
  %s10 = scalar_select 0, %s9, %s7
  $region1: #{tpu_custom_call.1} parent=0
    #allocation2 [shape = 'u8[32768]{0}', space=vmem, size = 0x8000, scoped, tag = 'input window, operand 0']
    #allocation3 [shape = 's32[2]{0}', space=sflag, size = 0x8, scoped, tag = 'scoped memory for tpu_custom_call.1']
    #allocation4 [shape = 's32[2]{0}', space=sflag, size = 0x8, scoped, tag = 'scoped memory for tpu_custom_call.1']
    #allocation5 [shape = 'u8[36864]{0}', space=vmem, size = 0x9000, scoped, tag = 'input window, operand 1, single buffered']
    #allocation6 [shape = 's32[1]{0}', space=sflag, size = 0x4, scoped, tag = 'scoped memory for tpu_custom_call.1']
    #allocation7 [shape = 'u8[24576]{0}', space=vmem, size = 0x6000, scoped, tag = 'output window, operand 0']
    %11 = vsyncpa [#allocation3], 0
    %s12 = scalar_lea.sflag [#allocation3], 1
    %13 = vsyncpa %s12, 0
    %14 = vsyncpa [#allocation6], 0
    %15 = vsyncpa [#allocation4], 0
    %s16 = scalar_lea.sflag [#allocation4], 1
    %17 = vsyncpa %s16, 0
    loop: start=0, step=1, limit=4
    $region2: #{tpu_custom_call.1} parent=1 // loop_pre_header
      _
    $region3: #{tpu_custom_call.1} parent=1 // loop_header
      %s19 = sphi 0, %s23
      %p20 = scmp.ge.s32.totalorder %s19, 4
      %s26 = sphi 0, %s38
      %s27 = sphi 0, %s34
      %s28 = sphi 0, %s26
      %s29 = sphi 0, %s27
      %s30 = sphi 0, %s28
      %s31 = sphi 0, %s29
      %s41 = sphi 0, %s43
      %s44 = sphi 0, %s41
      %s45 = sphi 0, %s44
      %s61 = sphi 0, %s45
      %s65 = sphi 0, %s65
      %s67 = sphi 0, %s65
      %s68 = sphi 0, %s67
      %s82 = sphi 0, %s68
      %s88 = sphi 0, %s90
      %s91 = sphi 0, %s88
      %s92 = sphi 0, %s91
      %s108 = sphi 0, %s92
      %s116 = sphi 0, %s118
      %s119 = sphi 0, %s116
      %s120 = sphi 0, %s119
      %s136 = sphi 0, %s120
      %s144 = sphi 0, %s146
      %s147 = sphi 0, %s144
      %s148 = sphi 0, %s147
      %s164 = sphi 0, %s148
      %s172 = sphi 0, %s174
      %s175 = sphi 0, %s172
      %s176 = sphi 0, %s175
      %s192 = sphi 0, %s176
    $region4: #{tpu_custom_call.1} parent=1 // loop_header_branch
      %22 = sbr.rel (%p20) target = $region8
    $region5: #{tpu_custom_call.1} parent=1 // loop_body
      %s24 = ssub.s32 %s19, 1
      %s25 = ssub.s32 %s19, 2
      %s32 = sadd.s32 1, %s27
      %p33 = scmp.ge.s32.totalorder %s32, 1
      %s34 = scalar_select %p33, 0, %s32
      %s35 = sadd.s32 1, %s26
      %s36 = scalar_select %p33, %s35, %s26
      %p37 = scmp.ge.s32.totalorder %s36, 2
      %s38 = scalar_select %p37, 0, %s36
      %s39 = ssub.s32 %s26, %s38
      %p40 = scmp.eq.s32.totalorder %s39, 0
      %s42 = sadd.s32 %s41, 1
      %s43 = scalar_select %p40, %s41, %s42
      %p46 = pneg %p40
      %p47 = scmp.eq.s32.totalorder %s19, 1
      %p48 = por %p46, %p47
      %p49 = scmp.ne.s32.totalorder %s41, %s44
      %p50 = scmp.eq.s32.totalorder %s19, 0
      %p51 = por %p49, %p50
      %p52 = scmp.ne.s32.totalorder %s41, %s44
      %p53 = scmp.eq.s32.totalorder %s24, 1
      %p54 = por %p52, %p53
      %p55 = scmp.ne.s32.totalorder %s44, %s45
      %p56 = scmp.eq.s32.totalorder %s24, 0
      %p57 = por %p55, %p56
      %p58 = scmp.ne.s32.totalorder %s44, %s45
      %p59 = scmp.eq.s32.totalorder %s25, 1
      %p60 = por %p58, %p59
      %p62 = scmp.ne.s32.totalorder %s45, %s61
      %p63 = scmp.eq.s32.totalorder %s25, 0
      %p64 = por %p62, %p63
      %s66 = sadd.s32 %s65, 1
      %p69 = scmp.eq.s32.totalorder %s19, 1
      %p70 = scmp.ne.s32.totalorder %s65, %s67
      %p71 = scmp.eq.s32.totalorder %s19, 0
      %p72 = por %p70, %p71
      %p73 = scmp.ne.s32.totalorder %s65, %s67
      %p74 = scmp.eq.s32.totalorder %s24, 1
      %p75 = por %p73, %p74
      %p76 = scmp.ne.s32.totalorder %s67, %s68
      %p77 = scmp.eq.s32.totalorder %s24, 0
      %p78 = por %p76, %p77
      %p79 = scmp.ne.s32.totalorder %s67, %s68
      %p80 = scmp.eq.s32.totalorder %s25, 1
      %p81 = por %p79, %p80
      %p83 = scmp.ne.s32.totalorder %s68, %s82
      %p84 = scmp.eq.s32.totalorder %s25, 0
      %p85 = por %p83, %p84
      %s86 = ssub.s32 %s27, %s34
      %p87 = scmp.eq.s32.totalorder %s86, 0
      %s89 = sadd.s32 %s88, 1
      %s90 = scalar_select %p87, %s88, %s89
      %p93 = pneg %p87
      %p94 = scmp.eq.s32.totalorder %s19, 1
      %p95 = por %p93, %p94
      %p96 = scmp.ne.s32.totalorder %s88, %s91
      %p97 = scmp.eq.s32.totalorder %s19, 0
      %p98 = por %p96, %p97
      %p99 = scmp.ne.s32.totalorder %s88, %s91
      %p100 = scmp.eq.s32.totalorder %s24, 1
      %p101 = por %p99, %p100
      %p102 = scmp.ne.s32.totalorder %s91, %s92
      %p103 = scmp.eq.s32.totalorder %s24, 0
      %p104 = por %p102, %p103
      %p105 = scmp.ne.s32.totalorder %s91, %s92
      %p106 = scmp.eq.s32.totalorder %s25, 1
      %p107 = por %p105, %p106
      %p109 = scmp.ne.s32.totalorder %s92, %s108
      %p110 = scmp.eq.s32.totalorder %s25, 0
      %p111 = por %p109, %p110
      %s112 = ssub.s32 %s26, %s38
      %s113 = ssub.s32 %s27, %s34
      %s114 = sor.u32 %s112, %s113
      %p115 = scmp.eq.s32.totalorder %s114, 0
      %s117 = sadd.s32 %s116, 1
      %s118 = scalar_select %p115, %s116, %s117
      %p121 = pneg %p115
      %p122 = scmp.eq.s32.totalorder %s19, 1
      %p123 = por %p121, %p122
      %p124 = scmp.ne.s32.totalorder %s116, %s119
      %p125 = scmp.eq.s32.totalorder %s19, 0
      %p126 = por %p124, %p125
      %p127 = scmp.ne.s32.totalorder %s116, %s119
      %p128 = scmp.eq.s32.totalorder %s24, 1
      %p129 = por %p127, %p128
      %p130 = scmp.ne.s32.totalorder %s119, %s120
      %p131 = scmp.eq.s32.totalorder %s24, 0
      %p132 = por %p130, %p131
      %p133 = scmp.ne.s32.totalorder %s119, %s120
      %p134 = scmp.eq.s32.totalorder %s25, 1
      %p135 = por %p133, %p134
      %p137 = scmp.ne.s32.totalorder %s120, %s136
      %p138 = scmp.eq.s32.totalorder %s25, 0
      %p139 = por %p137, %p138
      %s140 = ssub.s32 %s26, %s38
      %s141 = ssub.s32 %s27, %s34
      %s142 = sor.u32 %s140, %s141
      %p143 = scmp.eq.s32.totalorder %s142, 0
      %s145 = sadd.s32 %s144, 1
      %s146 = scalar_select %p143, %s144, %s145
      %p149 = pneg %p143
      %p150 = scmp.eq.s32.totalorder %s19, 1
      %p151 = por %p149, %p150
      %p152 = scmp.ne.s32.totalorder %s144, %s147
      %p153 = scmp.eq.s32.totalorder %s19, 0
      %p154 = por %p152, %p153
      %p155 = scmp.ne.s32.totalorder %s144, %s147
      %p156 = scmp.eq.s32.totalorder %s24, 1
      %p157 = por %p155, %p156
      %p158 = scmp.ne.s32.totalorder %s147, %s148
      %p159 = scmp.eq.s32.totalorder %s24, 0
      %p160 = por %p158, %p159
      %p161 = scmp.ne.s32.totalorder %s147, %s148
      %p162 = scmp.eq.s32.totalorder %s25, 1
      %p163 = por %p161, %p162
      %p165 = scmp.ne.s32.totalorder %s148, %s164
      %p166 = scmp.eq.s32.totalorder %s25, 0
      %p167 = por %p165, %p166
      %s168 = ssub.s32 %s26, %s38
      %s169 = ssub.s32 %s27, %s34
      %s170 = sor.u32 %s168, %s169
      %p171 = scmp.eq.s32.totalorder %s170, 0
      %s173 = sadd.s32 %s172, 1
      %s174 = scalar_select %p171, %s172, %s173
      %p177 = pneg %p171
      %p178 = scmp.eq.s32.totalorder %s19, 1
      %p179 = por %p177, %p178
      %p180 = scmp.ne.s32.totalorder %s172, %s175
      %p181 = scmp.eq.s32.totalorder %s19, 0
      %p182 = por %p180, %p181
      %p183 = scmp.ne.s32.totalorder %s172, %s175
      %p184 = scmp.eq.s32.totalorder %s24, 1
      %p185 = por %p183, %p184
      %p186 = scmp.ne.s32.totalorder %s175, %s176
      %p187 = scmp.eq.s32.totalorder %s24, 0
      %p188 = por %p186, %p187
      %p189 = scmp.ne.s32.totalorder %s175, %s176
      %p190 = scmp.eq.s32.totalorder %s25, 1
      %p191 = por %p189, %p190
      %p193 = scmp.ne.s32.totalorder %s176, %s192
      %p194 = scmp.eq.s32.totalorder %s25, 0
      %p195 = por %p193, %p194
      %p196 = scmp.le.s32.totalorder 1, %s19
      %p197 = scmp.lt.s32.totalorder %s19, 3
      %p198 = pnand %p196, %p197
      %p199 = pneg %p198
      // Predicated region
      $region9: #{tpu_custom_call.1} parent=5 // pred_check
        _
      $region10: #{tpu_custom_call.1} parent=5 // pred_check_branch
        %201 = sbr.rel (%p198) target = $region12
      $region11: #{tpu_custom_call.1} parent=5 // pred_region
        %s202 = ssub.s32 %s19, 1
        // Predicated region
        $region13: #{tpu_custom_call.1} parent=11 // pred_check
          %p203 = pneg %p78
        $region14: #{tpu_custom_call.1} parent=11 // pred_check_branch
          %205 = sbr.rel (%p203) target = $region16
        $region15: #{tpu_custom_call.1} parent=11 // pred_region
          %s207 = ssub.s32 1152, 1152
          %208 = vsyncadd [#allocation6], %s207
          %s209 = sshll.u32 [#allocation5], 4
          %s210 = int_to_ptr.vmem [resolvable:$true] %s209
          %215 = dma.hbm_to_vmem [thread:$0]  %s1, 1152, %s210, [#allocation6], 64, 64, 4
        $region16: #{tpu_custom_call.1} parent=11 // pred_fallthru
          _
        // Predicated region
        $region17: #{tpu_custom_call.1} parent=11 // pred_check
          %p216 = pneg %p104
        $region18: #{tpu_custom_call.1} parent=11 // pred_check_branch
          %218 = sbr.rel (%p216) target = $region20
        $region19: #{tpu_custom_call.1} parent=11 // pred_region
          %s219 = smul.u32 3, %s29
          %p220 = scmp.lt.s32.totalorder %s219, 2
          %s221 = scalar_select %p220, %s219, 2
          %s222 = scalar_lea.vmem %s2, %s221
          %s223 = smul.u32 3, %s29
        $region20: #{tpu_custom_call.1} parent=11 // pred_fallthru
          _
      $region12: #{tpu_custom_call.1} parent=5 // pred_fallthru
        _
      %p224 = scmp.lt.s32.totalorder %s19, 2
      // Predicated region
      $region21: #{tpu_custom_call.1} parent=5 // pred_check
        %p225 = pneg %p224
      $region22: #{tpu_custom_call.1} parent=5 // pred_check_branch
        %227 = sbr.rel (%p225) target = $region24
      $region23: #{tpu_custom_call.1} parent=5 // pred_region
        // Predicated region
        $region25: #{tpu_custom_call.1} parent=23 // pred_check
          %p228 = pneg %p51
        $region26: #{tpu_custom_call.1} parent=23 // pred_check_branch
          %230 = sbr.rel (%p228) target = $region28
        $region27: #{tpu_custom_call.1} parent=23 // pred_region
          %s231 = sand.u32 %s41, 1
          %s232 = scalar_lea.sflag [#allocation3], %s231
          %s233 = sand.u32 %s41, 1
          %s234 = smul.addr %s233, 32
          %s235 = scalar_lea.vmem [#allocation2], %s234
          %s237 = ssub.s32 512, 512
          %238 = vsyncadd %s232, %s237
          %s239 = smul.addr %s26, 8
          %s240 = smul.addr %s239, 64
          %s241 = scalar_lea.hbm %s0, %s240
          %s242 = sshll.u32 %s235, 4
          %s243 = int_to_ptr.vmem [resolvable:$true] %s242
          %248 = dma.hbm_to_vmem [thread:$0]  %s241, 512, %s243, %s232, 256, 256, 16
        $region28: #{tpu_custom_call.1} parent=23 // pred_fallthru
          _
      $region24: #{tpu_custom_call.1} parent=5 // pred_fallthru
        _
      %p249 = scmp.le.s32.totalorder 1, %s19
      %p250 = scmp.lt.s32.totalorder %s19, 3
      %p251 = pnand %p249, %p250
      %p252 = pneg %p251
      // Predicated region
      $region29: #{tpu_custom_call.1} parent=5 // pred_check
        _
      $region30: #{tpu_custom_call.1} parent=5 // pred_check_branch
        %254 = sbr.rel (%p251) target = $region32
      $region31: #{tpu_custom_call.1} parent=5 // pred_region
        %s255 = ssub.s32 %s19, 1
        %s256 = sand.u32 %s44, 1
        %s257 = scalar_lea.sflag [#allocation3], %s256
        %s258 = sand.u32 %s44, 1
        %s259 = smul.addr %s258, 32
        %s260 = scalar_lea.vmem [#allocation2], %s259
        // Predicated region
        $region33: #{tpu_custom_call.1} parent=31 // pred_check
          %p261 = pneg %p57
        $region34: #{tpu_custom_call.1} parent=31 // pred_check_branch
          %263 = sbr.rel (%p261) target = $region36
        $region35: #{tpu_custom_call.1} parent=31 // pred_region
          %264 = dma.done %s257, 512
        $region36: #{tpu_custom_call.1} parent=31 // pred_fallthru
          _
        // Predicated region
        $region37: #{tpu_custom_call.1} parent=31 // pred_check
          %p265 = pneg %p78
        $region38: #{tpu_custom_call.1} parent=31 // pred_check_branch
          %267 = sbr.rel (%p265) target = $region40
        $region39: #{tpu_custom_call.1} parent=31 // pred_region
          %268 = dma.done [#allocation6], 1152
        $region40: #{tpu_custom_call.1} parent=31 // pred_fallthru
          _
        %s269 = sand.u32 %s44, 1
        %s270 = scalar_lea.sflag [#allocation3], %s269
        %s271 = sand.u32 %s44, 1
        %s272 = smul.addr %s271, 32
        %s273 = scalar_lea.vmem [#allocation2], %s272
        %p274 = pneg %p57
        %p275 = pneg %p54
        %p276 = pneg %p78
        %p277 = pneg %p75
        %s278 = smul.u32 3, %s29
        %p279 = scmp.lt.s32.totalorder %s278, 2
        %s280 = scalar_select %p279, %s278, 2
        %s281 = scalar_lea.vmem %s2, %s280
        %p282 = pneg %p104
        %p283 = pneg %p101
        %p284 = pneg %p132
        %p285 = pneg %p129
        %s286 = sand.u32 %s119, 1
        %s287 = scalar_lea.sflag [#allocation4], %s286
        %s288 = sand.u32 %s119, 1
        %s289 = smul.addr %s288, 24
        %s290 = scalar_lea.vmem [#allocation7], %s289
        %p291 = pneg %p160
        %p292 = pneg %p157
        %p293 = scmp.lt.s32.totalorder %s28, 1
        %s294 = scalar_select %p293, %s28, 1
        %p295 = scmp.lt.s32.totalorder %s29, 0
        %s296 = scalar_select %p295, %s29, 0
        %s297 = smul.addr %s296, 2
        %s298 = smul.addr %s294, 2
        %s299 = sadd.s32 %s297, %s298
        %s300 = smul.addr %s299, 8
        %s301 = scalar_lea.vmem %s4, %s300
        %p302 = pneg %p188
        %p303 = pneg %p185
        %p304 = scmp.lt.s32.totalorder %s28, 1
        %s305 = scalar_select %p304, %s28, 1
        %p306 = scmp.lt.s32.totalorder %s29, 0
        %s307 = scalar_select %p306, %s29, 0
        %s308 = smul.addr %s307, 2
        %s309 = smul.addr %s305, 2
        %s310 = sadd.s32 %s308, %s309
        %s311 = smul.addr %s310, 8
        %s312 = scalar_lea.vmem %s5, %s311
        %s313 = smul.u32 3, %s29
        %p314 = scmp.lt.s32.totalorder %s313, 2
        %s315 = scalar_select %p314, %s313, 2
        %s316 = scalar_lea.vmem %s2, %s315
        %s317 = smul.u32 3, %s29
        %s318 = smul.u32 3, %s29
        %p319 = scmp.lt.s32.totalorder %s28, 1
        %s320 = scalar_select %p319, %s28, 1
        %p321 = scmp.lt.s32.totalorder %s29, 0
        %s322 = scalar_select %p321, %s29, 0
        %s323 = smul.addr %s322, 2
        %s324 = smul.addr %s320, 2
        %s325 = sadd.s32 %s323, %s324
        %s326 = smul.addr %s325, 8
        %s327 = scalar_lea.vmem %s4, %s326
        %p328 = scmp.lt.s32.totalorder %s28, 1
        %s329 = scalar_select %p328, %s28, 1
        %p330 = scmp.lt.s32.totalorder %s29, 0
        %s331 = scalar_select %p330, %s29, 0
        %s332 = smul.addr %s331, 2
        %s333 = smul.addr %s329, 2
        %s334 = sadd.s32 %s332, %s333
        %s335 = smul.addr %s334, 8
        %s336 = scalar_lea.vmem %s5, %s335
        %v338 = vld [vmem:[%s260] sm:$0xff]
        %v339 = vld [vmem:[%s260 + $0x8] sm:$0xff]
        %v340 = vld [vmem:[%s260 + $0x10] sm:$0xff]
        %v341 = vld [vmem:[%s260 + $0x18] sm:$0xff]
        %v342 = vld [vmem:[#allocation5] sm:$0xf]
        %v343 = vld [vmem:[#allocation5 + $0x4] sm:$0xf]
        %s344 = scalar_lea.vmem [#allocation5], 8
        %v345 = vld [vmem:[%s344] sm:$0xf]
        %v346 = vld [vmem:[%s344 + $0x4] sm:$0xf]
        %v349 = vunpack.c.l.b16 %v345
        %v350 = vunpack.c.l.b16 %v346
        %v351 = vpack.c.b16 %v350, %v349
        %v356 = vunpack.c.l.b16 %v338
        %v357 = vunpack.c.h.b16 %v338
        %v358 = vunpack.c.l.b16 %v339
        %v359 = vunpack.c.h.b16 %v339
        %v360 = vunpack.c.l.b16 %v340
        %v361 = vunpack.c.h.b16 %v340
        %v362 = vunpack.c.l.b16 %v341
        %v363 = vunpack.c.h.b16 %v341
        %v364 = vpack.c.b16 %v360, %v356
        %v365 = vpack.c.b16 %v361, %v357
        %v366 = vpack.c.b16 %v362, %v358
        %v367 = vpack.c.b16 %v363, %v359
        %368 = vrot.lane.b32.xlu0 %v364, 127
        %v369 = vpop.permute.xlu0 %368
        %370 = vrot.lane.b32.xlu0 %v365, 127
        %v371 = vpop.permute.xlu0 %370
        %372 = vrot.lane.b32.xlu0 %v366, 127
        %v373 = vpop.permute.xlu0 %372
        %374 = vrot.lane.b32.xlu0 %v367, 127
        %v375 = vpop.permute.xlu0 %374
        %vm376 = vcmask 1039360
        %v377 = vsel %vm376, %v369, %v371
        %v378 = vsel %vm376, %v371, %v373
        %v379 = vsel %vm376, %v373, %v375
        %vm383 = vcmask 130048
        %v385 = vsel %vm383, %v351, 0
        %387 = vmatprep.subr.bf16.mxu0 %v378
        %388 = vmatpush1.bf16.msra.mxu0 %v377
        %389 = vmatprep.subr.bf16.mxu0 0
        %390 = vmatpush1.bf16.msra.mxu0 0
        %391 = vmatprep.subr.bf16.mxu0 0
        %392 = vmatpush1.bf16.msra.mxu0 0
        %393 = vmatprep.subr.bf16.mxu0 0
        %394 = vmatpush1.bf16.msra.mxu0 0
        %395 = vmatprep.subr.bf16.mxu0 0
        %396 = vmatpush1.bf16.msra.mxu0 0
        %397 = vmatprep.subr.bf16.mxu0 0
        %398 = vmatpush1.bf16.msra.mxu0 0
        %399 = vmatprep.subr.bf16.mxu0 0
        %400 = vmatpush1.bf16.msra.mxu0 0
        %401 = vmatprep.subr.bf16.mxu0 0
        %402 = vmatpush1.bf16.msra.mxu0 0
        %403 = vmatprep.subr.bf16.mxu0 0
        %404 = vmatpush1.bf16.msra.mxu0 0
        %405 = vmatprep.subr.bf16.mxu0 0
        %406 = vmatpush1.bf16.msra.mxu0 0
        %407 = vmatprep.subr.bf16.mxu0 0
        %408 = vmatpush1.bf16.msra.mxu0 0
        %409 = vmatprep.subr.bf16.mxu0 0
        %410 = vmatpush1.bf16.msra.mxu0 0
        %411 = vmatprep.subr.bf16.mxu0 0
        %412 = vmatpush1.bf16.msra.mxu0 0
        %413 = vmatprep.subr.bf16.mxu0 0
        %414 = vmatpush1.bf16.msra.mxu0 0
        %415 = vmatprep.subr.bf16.mxu0 0
        %416 = vmatpush1.bf16.msra.mxu0 0
        %417 = vmatprep.subr.bf16.mxu0 0
        %418 = vmatpush1.bf16.msra.mxu0 0
        %419 = vmatprep.mubr.bf16.mxu0 0
        %420 = vmatmul.mubr.bf16.gmra.mrb[0].mxu0 %v385
        %v421 = vpop.f32.mrb[0].mxu0
        %v422 = vadd.f32 0.0, %v421
        %v423 = vpop.f32.mrb[0].mxu0
        %v424 = vadd.f32 0.0, %v423
        %v425 = vpop.f32.mrb[0].mxu0
        %v426 = vadd.f32 0.0, %v425
        %v427 = vpop.f32.mrb[0].mxu0
        %v428 = vadd.f32 0.0, %v427
        %429 = vdwg.mxu0
        %430 = vmatprep.subr.bf16.mxu0 0
        %431 = vmatpush1.bf16.msra.mxu0 %v379
        %432 = vmatprep.subr.bf16.mxu0 0
        %433 = vmatpush1.bf16.msra.mxu0 0
        %434 = vmatprep.subr.bf16.mxu0 0
        %435 = vmatpush1.bf16.msra.mxu0 0
        %436 = vmatprep.subr.bf16.mxu0 0
        %437 = vmatpush1.bf16.msra.mxu0 0
        %438 = vmatprep.subr.bf16.mxu0 0
        %439 = vmatpush1.bf16.msra.mxu0 0
        %440 = vmatprep.subr.bf16.mxu0 0
        %441 = vmatpush1.bf16.msra.mxu0 0
        %442 = vmatprep.subr.bf16.mxu0 0
        %443 = vmatpush1.bf16.msra.mxu0 0
        %444 = vmatprep.subr.bf16.mxu0 0
        %445 = vmatpush1.bf16.msra.mxu0 0
        %446 = vmatprep.subr.bf16.mxu0 0
        %447 = vmatpush1.bf16.msra.mxu0 0
        %448 = vmatprep.subr.bf16.mxu0 0
        %449 = vmatpush1.bf16.msra.mxu0 0
        %450 = vmatprep.subr.bf16.mxu0 0
        %451 = vmatpush1.bf16.msra.mxu0 0
        %452 = vmatprep.subr.bf16.mxu0 0
        %453 = vmatpush1.bf16.msra.mxu0 0
        %454 = vmatprep.subr.bf16.mxu0 0
        %455 = vmatpush1.bf16.msra.mxu0 0
        %456 = vmatprep.subr.bf16.mxu0 0
        %457 = vmatpush1.bf16.msra.mxu0 0
        %458 = vmatprep.subr.bf16.mxu0 0
        %459 = vmatpush1.bf16.msra.mxu0 0
        %460 = vmatprep.subr.bf16.mxu0 0
        %461 = vmatpush1.bf16.msra.mxu0 0
        %462 = vmatprep.mubr.bf16.mxu0 0
        %463 = vmatmul.mubr.bf16.gmra.mrb[0].mxu0 %v385
        %v464 = vpop.f32.mrb[0].mxu0
        %v465 = vadd.f32 0.0, %v464
        %v466 = vpop.f32.mrb[0].mxu0
        %v467 = vpop.f32.mrb[0].mxu0
        %v468 = vadd.f32 0.0, %v467
        %v469 = vpop.f32.mrb[0].mxu0
        %470 = vdwg.mxu0
        %v473 = vunpack.c.l.b16 %v342
        %v474 = vunpack.c.l.b16 %v343
        %v475 = vpack.c.b16 %v474, %v473
        %v480 = vsel %vm383, %v475, 0
        %482 = vmatprep.subr.bf16.mxu0 %v365
        %483 = vmatpush1.bf16.msra.mxu0 %v364
        %484 = vmatprep.subr.bf16.mxu0 0
        %485 = vmatpush1.bf16.msra.mxu0 0
        %486 = vmatprep.subr.bf16.mxu0 0
        %487 = vmatpush1.bf16.msra.mxu0 0
        %488 = vmatprep.subr.bf16.mxu0 0
        %489 = vmatpush1.bf16.msra.mxu0 0
        %490 = vmatprep.subr.bf16.mxu0 0
        %491 = vmatpush1.bf16.msra.mxu0 0
        %492 = vmatprep.subr.bf16.mxu0 0
        %493 = vmatpush1.bf16.msra.mxu0 0
        %494 = vmatprep.subr.bf16.mxu0 0
        %495 = vmatpush1.bf16.msra.mxu0 0
        %496 = vmatprep.subr.bf16.mxu0 0
        %497 = vmatpush1.bf16.msra.mxu0 0
        %498 = vmatprep.subr.bf16.mxu0 0
        %499 = vmatpush1.bf16.msra.mxu0 0
        %500 = vmatprep.subr.bf16.mxu0 0
        %501 = vmatpush1.bf16.msra.mxu0 0
        %502 = vmatprep.subr.bf16.mxu0 0
        %503 = vmatpush1.bf16.msra.mxu0 0
        %504 = vmatprep.subr.bf16.mxu0 0
        %505 = vmatpush1.bf16.msra.mxu0 0
        %506 = vmatprep.subr.bf16.mxu0 0
        %507 = vmatpush1.bf16.msra.mxu0 0
        %508 = vmatprep.subr.bf16.mxu0 0
        %509 = vmatpush1.bf16.msra.mxu0 0
        %510 = vmatprep.subr.bf16.mxu0 0
        %511 = vmatpush1.bf16.msra.mxu0 0
        %512 = vmatprep.subr.bf16.mxu0 0
        %513 = vmatpush1.bf16.msra.mxu0 0
        %514 = vmatprep.mubr.bf16.mxu0 0
        %515 = vmatmul.mubr.bf16.gmra.mrb[0].mxu0 %v480
        %v516 = vpop.f32.mrb[0].mxu0
        %v517 = vadd.f32 %v422, %v516
        %v518 = vpop.f32.mrb[0].mxu0
        %v519 = vadd.f32 %v424, %v518
        %v520 = vpop.f32.mrb[0].mxu0
        %v521 = vadd.f32 %v426, %v520
        %v522 = vpop.f32.mrb[0].mxu0
        %v523 = vadd.f32 %v428, %v522
        %524 = vdwg.mxu0
        %525 = vmatprep.subr.bf16.mxu0 0
        %526 = vmatpush1.bf16.msra.mxu0 %v366
        %527 = vmatprep.subr.bf16.mxu0 0
        %528 = vmatpush1.bf16.msra.mxu0 0
        %529 = vmatprep.subr.bf16.mxu0 0
        %530 = vmatpush1.bf16.msra.mxu0 0
        %531 = vmatprep.subr.bf16.mxu0 0
        %532 = vmatpush1.bf16.msra.mxu0 0
        %533 = vmatprep.subr.bf16.mxu0 0
        %534 = vmatpush1.bf16.msra.mxu0 0
        %535 = vmatprep.subr.bf16.mxu0 0
        %536 = vmatpush1.bf16.msra.mxu0 0
        %537 = vmatprep.subr.bf16.mxu0 0
        %538 = vmatpush1.bf16.msra.mxu0 0
        %539 = vmatprep.subr.bf16.mxu0 0
        %540 = vmatpush1.bf16.msra.mxu0 0
        %541 = vmatprep.subr.bf16.mxu0 0
        %542 = vmatpush1.bf16.msra.mxu0 0
        %543 = vmatprep.subr.bf16.mxu0 0
        %544 = vmatpush1.bf16.msra.mxu0 0
        %545 = vmatprep.subr.bf16.mxu0 0
        %546 = vmatpush1.bf16.msra.mxu0 0
        %547 = vmatprep.subr.bf16.mxu0 0
        %548 = vmatpush1.bf16.msra.mxu0 0
        %549 = vmatprep.subr.bf16.mxu0 0
        %550 = vmatpush1.bf16.msra.mxu0 0
        %551 = vmatprep.subr.bf16.mxu0 0
        %552 = vmatpush1.bf16.msra.mxu0 0
        %553 = vmatprep.subr.bf16.mxu0 0
        %554 = vmatpush1.bf16.msra.mxu0 0
        %555 = vmatprep.subr.bf16.mxu0 0
        %556 = vmatpush1.bf16.msra.mxu0 0
        %557 = vmatprep.mubr.bf16.mxu0 0
        %558 = vmatmul.mubr.bf16.gmra.mrb[0].mxu0 %v480
        %v559 = vpop.f32.mrb[0].mxu0
        %v560 = vadd.f32 %v465, %v559
        %v561 = vpop.f32.mrb[0].mxu0
        %v562 = vpop.f32.mrb[0].mxu0
        %v563 = vadd.f32 %v468, %v562
        %v564 = vpop.f32.mrb[0].mxu0
        %565 = vdwg.mxu0
        %s566 = scalar_lea.vmem [#allocation5], 16
        %v567 = vld [vmem:[%s566] sm:$0xf]
        %v568 = vld [vmem:[%s566 + $0x4] sm:$0xf]
        %v571 = vunpack.c.l.b16 %v567
        %v572 = vunpack.c.l.b16 %v568
        %v573 = vpack.c.b16 %v572, %v571
        %574 = vrot.lane.b32.xlu0 %v364, 126
        %v575 = vpop.permute.xlu0 %574
        %576 = vrot.lane.b32.xlu0 %v365, 126
        %v577 = vpop.permute.xlu0 %576
        %578 = vrot.lane.b32.xlu0 %v366, 126
        %v579 = vpop.permute.xlu0 %578
        %580 = vrot.lane.b32.xlu0 %v367, 126
        %v581 = vpop.permute.xlu0 %580
        %vm582 = vcmask 1031168
        %v583 = vsel %vm582, %v575, %v577
        %v584 = vsel %vm582, %v577, %v579
        %v585 = vsel %vm582, %v579, %v581
        %v590 = vsel %vm383, %v573, 0
        %592 = vmatprep.subr.bf16.mxu0 %v584
        %593 = vmatpush1.bf16.msra.mxu0 %v583
        %594 = vmatprep.subr.bf16.mxu0 0
        %595 = vmatpush1.bf16.msra.mxu0 0
        %596 = vmatprep.subr.bf16.mxu0 0
        %597 = vmatpush1.bf16.msra.mxu0 0
        %598 = vmatprep.subr.bf16.mxu0 0
        %599 = vmatpush1.bf16.msra.mxu0 0
        %600 = vmatprep.subr.bf16.mxu0 0
        %601 = vmatpush1.bf16.msra.mxu0 0
        %602 = vmatprep.subr.bf16.mxu0 0
        %603 = vmatpush1.bf16.msra.mxu0 0
        %604 = vmatprep.subr.bf16.mxu0 0
        %605 = vmatpush1.bf16.msra.mxu0 0
        %606 = vmatprep.subr.bf16.mxu0 0
        %607 = vmatpush1.bf16.msra.mxu0 0
        %608 = vmatprep.subr.bf16.mxu0 0
        %609 = vmatpush1.bf16.msra.mxu0 0
        %610 = vmatprep.subr.bf16.mxu0 0
        %611 = vmatpush1.bf16.msra.mxu0 0
        %612 = vmatprep.subr.bf16.mxu0 0
        %613 = vmatpush1.bf16.msra.mxu0 0
        %614 = vmatprep.subr.bf16.mxu0 0
        %615 = vmatpush1.bf16.msra.mxu0 0
        %616 = vmatprep.subr.bf16.mxu0 0
        %617 = vmatpush1.bf16.msra.mxu0 0
        %618 = vmatprep.subr.bf16.mxu0 0
        %619 = vmatpush1.bf16.msra.mxu0 0
        %620 = vmatprep.subr.bf16.mxu0 0
        %621 = vmatpush1.bf16.msra.mxu0 0
        %622 = vmatprep.subr.bf16.mxu0 0
        %623 = vmatpush1.bf16.msra.mxu0 0
        %624 = vmatprep.mubr.bf16.mxu0 0
        %625 = vmatmul.mubr.bf16.gmra.mrb[0].mxu0 %v590
        %v626 = vpop.f32.mrb[0].mxu0
        %v627 = vadd.f32 0.0, %v626
        %v628 = vpop.f32.mrb[0].mxu0
        %v629 = vadd.f32 0.0, %v628
        %v630 = vpop.f32.mrb[0].mxu0
        %v631 = vadd.f32 0.0, %v630
        %v632 = vpop.f32.mrb[0].mxu0
        %v633 = vadd.f32 0.0, %v632
        %634 = vdwg.mxu0
        %635 = vmatprep.subr.bf16.mxu0 0
        %636 = vmatpush1.bf16.msra.mxu0 %v585
        %637 = vmatprep.subr.bf16.mxu0 0
        %638 = vmatpush1.bf16.msra.mxu0 0
        %639 = vmatprep.subr.bf16.mxu0 0
        %640 = vmatpush1.bf16.msra.mxu0 0
        %641 = vmatprep.subr.bf16.mxu0 0
        %642 = vmatpush1.bf16.msra.mxu0 0
        %643 = vmatprep.subr.bf16.mxu0 0
        %644 = vmatpush1.bf16.msra.mxu0 0
        %645 = vmatprep.subr.bf16.mxu0 0
        %646 = vmatpush1.bf16.msra.mxu0 0
        %647 = vmatprep.subr.bf16.mxu0 0
        %648 = vmatpush1.bf16.msra.mxu0 0
        %649 = vmatprep.subr.bf16.mxu0 0
        %650 = vmatpush1.bf16.msra.mxu0 0
        %651 = vmatprep.subr.bf16.mxu0 0
        %652 = vmatpush1.bf16.msra.mxu0 0
        %653 = vmatprep.subr.bf16.mxu0 0
        %654 = vmatpush1.bf16.msra.mxu0 0
        %655 = vmatprep.subr.bf16.mxu0 0
        %656 = vmatpush1.bf16.msra.mxu0 0
        %657 = vmatprep.subr.bf16.mxu0 0
        %658 = vmatpush1.bf16.msra.mxu0 0
        %659 = vmatprep.subr.bf16.mxu0 0
        %660 = vmatpush1.bf16.msra.mxu0 0
        %661 = vmatprep.subr.bf16.mxu0 0
        %662 = vmatpush1.bf16.msra.mxu0 0
        %663 = vmatprep.subr.bf16.mxu0 0
        %664 = vmatpush1.bf16.msra.mxu0 0
        %665 = vmatprep.subr.bf16.mxu0 0
        %666 = vmatpush1.bf16.msra.mxu0 0
        %667 = vmatprep.mubr.bf16.mxu0 0
        %668 = vmatmul.mubr.bf16.gmra.mrb[0].mxu0 %v590
        %v669 = vpop.f32.mrb[0].mxu0
        %v670 = vadd.f32 0.0, %v669
        %v671 = vpop.f32.mrb[0].mxu0
        %v672 = vpop.f32.mrb[0].mxu0
        %v673 = vadd.f32 0.0, %v672
        %v674 = vpop.f32.mrb[0].mxu0
        %675 = vdwg.mxu0
        %v676 = vadd.f32 %v517, %v627
        %v677 = vadd.f32 %v519, %v629
        %v678 = vadd.f32 %v560, %v670
        %v679 = vadd.f32 %v521, %v631
        %v680 = vadd.f32 %v523, %v633
        %v681 = vadd.f32 %v563, %v673
        %s682 = scalar_lea.vmem [#allocation5], 24
        %v683 = vld [vmem:[%s682] sm:$0xf]
        %v684 = vld [vmem:[%s682 + $0x4] sm:$0xf]
        %v687 = vunpack.c.l.b16 %v683
        %v688 = vunpack.c.l.b16 %v684
        %v689 = vpack.c.b16 %v688, %v687
        %690 = vrot.lane.b32.xlu0 %v364, 110
        %v691 = vpop.permute.xlu0 %690
        %692 = vrot.lane.b32.xlu0 %v365, 110
        %v693 = vpop.permute.xlu0 %692
        %694 = vrot.lane.b32.xlu0 %v366, 110
        %v695 = vpop.permute.xlu0 %694
        %696 = vrot.lane.b32.xlu0 %v367, 110
        %v697 = vpop.permute.xlu0 %696
        %vm698 = vcmask 900096
        %v699 = vsel %vm698, %v691, %v693
        %v700 = vsel %vm698, %v693, %v695
        %v701 = vsel %vm698, %v695, %v697
        %v706 = vsel %vm383, %v689, 0
        %708 = vmatprep.subr.bf16.mxu0 %v700
        %709 = vmatpush1.bf16.msra.mxu0 %v699
        %710 = vmatprep.subr.bf16.mxu0 0
        %711 = vmatpush1.bf16.msra.mxu0 0
        %712 = vmatprep.subr.bf16.mxu0 0
        %713 = vmatpush1.bf16.msra.mxu0 0
        %714 = vmatprep.subr.bf16.mxu0 0
        %715 = vmatpush1.bf16.msra.mxu0 0
        %716 = vmatprep.subr.bf16.mxu0 0
        %717 = vmatpush1.bf16.msra.mxu0 0
        %718 = vmatprep.subr.bf16.mxu0 0
        %719 = vmatpush1.bf16.msra.mxu0 0
        %720 = vmatprep.subr.bf16.mxu0 0
        %721 = vmatpush1.bf16.msra.mxu0 0
        %722 = vmatprep.subr.bf16.mxu0 0
        %723 = vmatpush1.bf16.msra.mxu0 0
        %724 = vmatprep.subr.bf16.mxu0 0
        %725 = vmatpush1.bf16.msra.mxu0 0
        %726 = vmatprep.subr.bf16.mxu0 0
        %727 = vmatpush1.bf16.msra.mxu0 0
        %728 = vmatprep.subr.bf16.mxu0 0
        %729 = vmatpush1.bf16.msra.mxu0 0
        %730 = vmatprep.subr.bf16.mxu0 0
        %731 = vmatpush1.bf16.msra.mxu0 0
        %732 = vmatprep.subr.bf16.mxu0 0
        %733 = vmatpush1.bf16.msra.mxu0 0
        %734 = vmatprep.subr.bf16.mxu0 0
        %735 = vmatpush1.bf16.msra.mxu0 0
        %736 = vmatprep.subr.bf16.mxu0 0
        %737 = vmatpush1.bf16.msra.mxu0 0
        %738 = vmatprep.subr.bf16.mxu0 0
        %739 = vmatpush1.bf16.msra.mxu0 0
        %740 = vmatprep.mubr.bf16.mxu0 0
        %741 = vmatmul.mubr.bf16.gmra.mrb[0].mxu0 %v706
        %v742 = vpop.f32.mrb[0].mxu0
        %v743 = vadd.f32 0.0, %v742
        %v744 = vpop.f32.mrb[0].mxu0
        %v745 = vadd.f32 0.0, %v744
        %v746 = vpop.f32.mrb[0].mxu0
        %v747 = vadd.f32 0.0, %v746
        %v748 = vpop.f32.mrb[0].mxu0
        %v749 = vadd.f32 0.0, %v748
        %750 = vdwg.mxu0
        %751 = vmatprep.subr.bf16.mxu0 0
        %752 = vmatpush1.bf16.msra.mxu0 %v701
        %753 = vmatprep.subr.bf16.mxu0 0
        %754 = vmatpush1.bf16.msra.mxu0 0
        %755 = vmatprep.subr.bf16.mxu0 0
        %756 = vmatpush1.bf16.msra.mxu0 0
        %757 = vmatprep.subr.bf16.mxu0 0
        %758 = vmatpush1.bf16.msra.mxu0 0
        %759 = vmatprep.subr.bf16.mxu0 0
        %760 = vmatpush1.bf16.msra.mxu0 0
        %761 = vmatprep.subr.bf16.mxu0 0
        %762 = vmatpush1.bf16.msra.mxu0 0
        %763 = vmatprep.subr.bf16.mxu0 0
        %764 = vmatpush1.bf16.msra.mxu0 0
        %765 = vmatprep.subr.bf16.mxu0 0
        %766 = vmatpush1.bf16.msra.mxu0 0
        %767 = vmatprep.subr.bf16.mxu0 0
        %768 = vmatpush1.bf16.msra.mxu0 0
        %769 = vmatprep.subr.bf16.mxu0 0
        %770 = vmatpush1.bf16.msra.mxu0 0
        %771 = vmatprep.subr.bf16.mxu0 0
        %772 = vmatpush1.bf16.msra.mxu0 0
        %773 = vmatprep.subr.bf16.mxu0 0
        %774 = vmatpush1.bf16.msra.mxu0 0
        %775 = vmatprep.subr.bf16.mxu0 0
        %776 = vmatpush1.bf16.msra.mxu0 0
        %777 = vmatprep.subr.bf16.mxu0 0
        %778 = vmatpush1.bf16.msra.mxu0 0
        %779 = vmatprep.subr.bf16.mxu0 0
        %780 = vmatpush1.bf16.msra.mxu0 0
        %781 = vmatprep.subr.bf16.mxu0 0
        %782 = vmatpush1.bf16.msra.mxu0 0
        %783 = vmatprep.mubr.bf16.mxu0 0
        %784 = vmatmul.mubr.bf16.gmra.mrb[0].mxu0 %v706
        %v785 = vpop.f32.mrb[0].mxu0
        %v786 = vadd.f32 0.0, %v785
        %v787 = vpop.f32.mrb[0].mxu0
        %v788 = vpop.f32.mrb[0].mxu0
        %v789 = vadd.f32 0.0, %v788
        %v790 = vpop.f32.mrb[0].mxu0
        %791 = vdwg.mxu0
        %v792 = vadd.f32 %v676, %v743
        %v793 = vadd.f32 %v677, %v745
        %v794 = vadd.f32 %v678, %v786
        %v795 = vadd.f32 %v679, %v747
        %v796 = vadd.f32 %v680, %v749
        %v797 = vadd.f32 %v681, %v789
        %s798 = scalar_lea.vmem [#allocation5], 32
        %v799 = vld [vmem:[%s798] sm:$0xf]
        %v800 = vld [vmem:[%s798 + $0x4] sm:$0xf]
        %v803 = vunpack.c.l.b16 %v799
        %v804 = vunpack.c.l.b16 %v800
        %v805 = vpack.c.b16 %v804, %v803
        %806 = vrot.lane.b32.xlu0 %v364, 109
        %v807 = vpop.permute.xlu0 %806
        %808 = vrot.lane.b32.xlu0 %v365, 109
        %v809 = vpop.permute.xlu0 %808
        %810 = vrot.lane.b32.xlu0 %v366, 109
        %v811 = vpop.permute.xlu0 %810
        %812 = vrot.lane.b32.xlu0 %v367, 109
        %v813 = vpop.permute.xlu0 %812
        %vm814 = vcmask 891904
        %v815 = vsel %vm814, %v807, %v809
        %v816 = vsel %vm814, %v809, %v811
        %v817 = vsel %vm814, %v811, %v813
        %v822 = vsel %vm383, %v805, 0
        %824 = vmatprep.subr.bf16.mxu0 %v816
        %825 = vmatpush1.bf16.msra.mxu0 %v815
        %826 = vmatprep.subr.bf16.mxu0 0
        %827 = vmatpush1.bf16.msra.mxu0 0
        %828 = vmatprep.subr.bf16.mxu0 0
        %829 = vmatpush1.bf16.msra.mxu0 0
        %830 = vmatprep.subr.bf16.mxu0 0
        %831 = vmatpush1.bf16.msra.mxu0 0
        %832 = vmatprep.subr.bf16.mxu0 0
        %833 = vmatpush1.bf16.msra.mxu0 0
        %834 = vmatprep.subr.bf16.mxu0 0
        %835 = vmatpush1.bf16.msra.mxu0 0
        %836 = vmatprep.subr.bf16.mxu0 0
        %837 = vmatpush1.bf16.msra.mxu0 0
        %838 = vmatprep.subr.bf16.mxu0 0
        %839 = vmatpush1.bf16.msra.mxu0 0
        %840 = vmatprep.subr.bf16.mxu0 0
        %841 = vmatpush1.bf16.msra.mxu0 0
        %842 = vmatprep.subr.bf16.mxu0 0
        %843 = vmatpush1.bf16.msra.mxu0 0
        %844 = vmatprep.subr.bf16.mxu0 0
        %845 = vmatpush1.bf16.msra.mxu0 0
        %846 = vmatprep.subr.bf16.mxu0 0
        %847 = vmatpush1.bf16.msra.mxu0 0
        %848 = vmatprep.subr.bf16.mxu0 0
        %849 = vmatpush1.bf16.msra.mxu0 0
        %850 = vmatprep.subr.bf16.mxu0 0
        %851 = vmatpush1.bf16.msra.mxu0 0
        %852 = vmatprep.subr.bf16.mxu0 0
        %853 = vmatpush1.bf16.msra.mxu0 0
        %854 = vmatprep.subr.bf16.mxu0 0
        %855 = vmatpush1.bf16.msra.mxu0 0
        %856 = vmatprep.mubr.bf16.mxu0 0
        %857 = vmatmul.mubr.bf16.gmra.mrb[0].mxu0 %v822
        %v858 = vpop.f32.mrb[0].mxu0
        %v859 = vadd.f32 0.0, %v858
        %v860 = vpop.f32.mrb[0].mxu0
        %v861 = vadd.f32 0.0, %v860
        %v862 = vpop.f32.mrb[0].mxu0
        %v863 = vadd.f32 0.0, %v862
        %v864 = vpop.f32.mrb[0].mxu0
        %v865 = vadd.f32 0.0, %v864
        %866 = vdwg.mxu0
        %867 = vmatprep.subr.bf16.mxu0 0
        %868 = vmatpush1.bf16.msra.mxu0 %v817
        %869 = vmatprep.subr.bf16.mxu0 0
        %870 = vmatpush1.bf16.msra.mxu0 0
        %871 = vmatprep.subr.bf16.mxu0 0
        %872 = vmatpush1.bf16.msra.mxu0 0
        %873 = vmatprep.subr.bf16.mxu0 0
        %874 = vmatpush1.bf16.msra.mxu0 0
        %875 = vmatprep.subr.bf16.mxu0 0
        %876 = vmatpush1.bf16.msra.mxu0 0
        %877 = vmatprep.subr.bf16.mxu0 0
        %878 = vmatpush1.bf16.msra.mxu0 0
        %879 = vmatprep.subr.bf16.mxu0 0
        %880 = vmatpush1.bf16.msra.mxu0 0
        %881 = vmatprep.subr.bf16.mxu0 0
        %882 = vmatpush1.bf16.msra.mxu0 0
        %883 = vmatprep.subr.bf16.mxu0 0
        %884 = vmatpush1.bf16.msra.mxu0 0
        %885 = vmatprep.subr.bf16.mxu0 0
        %886 = vmatpush1.bf16.msra.mxu0 0
        %887 = vmatprep.subr.bf16.mxu0 0
        %888 = vmatpush1.bf16.msra.mxu0 0
        %889 = vmatprep.subr.bf16.mxu0 0
        %890 = vmatpush1.bf16.msra.mxu0 0
        %891 = vmatprep.subr.bf16.mxu0 0
        %892 = vmatpush1.bf16.msra.mxu0 0
        %893 = vmatprep.subr.bf16.mxu0 0
        %894 = vmatpush1.bf16.msra.mxu0 0
        %895 = vmatprep.subr.bf16.mxu0 0
        %896 = vmatpush1.bf16.msra.mxu0 0
        %897 = vmatprep.subr.bf16.mxu0 0
        %898 = vmatpush1.bf16.msra.mxu0 0
        %899 = vmatprep.mubr.bf16.mxu0 0
        %900 = vmatmul.mubr.bf16.gmra.mrb[0].mxu0 %v822
        %v901 = vpop.f32.mrb[0].mxu0
        %v902 = vadd.f32 0.0, %v901
        %v903 = vpop.f32.mrb[0].mxu0
        %v904 = vpop.f32.mrb[0].mxu0
        %v905 = vadd.f32 0.0, %v904
        %v906 = vpop.f32.mrb[0].mxu0
        %907 = vdwg.mxu0
        %v908 = vadd.f32 %v792, %v859
        %v909 = vadd.f32 %v793, %v861
        %v910 = vadd.f32 %v794, %v902
        %v911 = vadd.f32 %v795, %v863
        %v912 = vadd.f32 %v796, %v865
        %v913 = vadd.f32 %v797, %v905
        %s914 = scalar_lea.vmem [#allocation5], 40
        %v915 = vld [vmem:[%s914] sm:$0xf]
        %v916 = vld [vmem:[%s914 + $0x4] sm:$0xf]
        %v919 = vunpack.c.l.b16 %v915
        %v920 = vunpack.c.l.b16 %v916
        %v921 = vpack.c.b16 %v920, %v919
        %922 = vrot.lane.b32.xlu0 %v364, 108
        %v923 = vpop.permute.xlu0 %922
        %924 = vrot.lane.b32.xlu0 %v365, 108
        %v925 = vpop.permute.xlu0 %924
        %926 = vrot.lane.b32.xlu0 %v366, 108
        %v927 = vpop.permute.xlu0 %926
        %928 = vrot.lane.b32.xlu0 %v367, 108
        %v929 = vpop.permute.xlu0 %928
        %vm930 = vcmask 883712
        %v931 = vsel %vm930, %v923, %v925
        %v932 = vsel %vm930, %v925, %v927
        %v933 = vsel %vm930, %v927, %v929
        %v938 = vsel %vm383, %v921, 0
        %940 = vmatprep.subr.bf16.mxu0 %v932
        %941 = vmatpush1.bf16.msra.mxu0 %v931
        %942 = vmatprep.subr.bf16.mxu0 0
        %943 = vmatpush1.bf16.msra.mxu0 0
        %944 = vmatprep.subr.bf16.mxu0 0
        %945 = vmatpush1.bf16.msra.mxu0 0
        %946 = vmatprep.subr.bf16.mxu0 0
        %947 = vmatpush1.bf16.msra.mxu0 0
        %948 = vmatprep.subr.bf16.mxu0 0
        %949 = vmatpush1.bf16.msra.mxu0 0
        %950 = vmatprep.subr.bf16.mxu0 0
        %951 = vmatpush1.bf16.msra.mxu0 0
        %952 = vmatprep.subr.bf16.mxu0 0
        %953 = vmatpush1.bf16.msra.mxu0 0
        %954 = vmatprep.subr.bf16.mxu0 0
        %955 = vmatpush1.bf16.msra.mxu0 0
        %956 = vmatprep.subr.bf16.mxu0 0
        %957 = vmatpush1.bf16.msra.mxu0 0
        %958 = vmatprep.subr.bf16.mxu0 0
        %959 = vmatpush1.bf16.msra.mxu0 0
        %960 = vmatprep.subr.bf16.mxu0 0
        %961 = vmatpush1.bf16.msra.mxu0 0
        %962 = vmatprep.subr.bf16.mxu0 0
        %963 = vmatpush1.bf16.msra.mxu0 0
        %964 = vmatprep.subr.bf16.mxu0 0
        %965 = vmatpush1.bf16.msra.mxu0 0
        %966 = vmatprep.subr.bf16.mxu0 0
        %967 = vmatpush1.bf16.msra.mxu0 0
        %968 = vmatprep.subr.bf16.mxu0 0
        %969 = vmatpush1.bf16.msra.mxu0 0
        %970 = vmatprep.subr.bf16.mxu0 0
        %971 = vmatpush1.bf16.msra.mxu0 0
        %972 = vmatprep.mubr.bf16.mxu0 0
        %973 = vmatmul.mubr.bf16.gmra.mrb[0].mxu0 %v938
        %v974 = vpop.f32.mrb[0].mxu0
        %v975 = vadd.f32 0.0, %v974
        %v976 = vpop.f32.mrb[0].mxu0
        %v977 = vadd.f32 0.0, %v976
        %v978 = vpop.f32.mrb[0].mxu0
        %v979 = vadd.f32 0.0, %v978
        %v980 = vpop.f32.mrb[0].mxu0
        %v981 = vadd.f32 0.0, %v980
        %982 = vdwg.mxu0
        %983 = vmatprep.subr.bf16.mxu0 0
        %984 = vmatpush1.bf16.msra.mxu0 %v933
        %985 = vmatprep.subr.bf16.mxu0 0
        %986 = vmatpush1.bf16.msra.mxu0 0
        %987 = vmatprep.subr.bf16.mxu0 0
        %988 = vmatpush1.bf16.msra.mxu0 0
        %989 = vmatprep.subr.bf16.mxu0 0
        %990 = vmatpush1.bf16.msra.mxu0 0
        %991 = vmatprep.subr.bf16.mxu0 0
        %992 = vmatpush1.bf16.msra.mxu0 0
        %993 = vmatprep.subr.bf16.mxu0 0
        %994 = vmatpush1.bf16.msra.mxu0 0
        %995 = vmatprep.subr.bf16.mxu0 0
        %996 = vmatpush1.bf16.msra.mxu0 0
        %997 = vmatprep.subr.bf16.mxu0 0
        %998 = vmatpush1.bf16.msra.mxu0 0
        %999 = vmatprep.subr.bf16.mxu0 0
        %1000 = vmatpush1.bf16.msra.mxu0 0
        %1001 = vmatprep.subr.bf16.mxu0 0
        %1002 = vmatpush1.bf16.msra.mxu0 0
        %1003 = vmatprep.subr.bf16.mxu0 0
        %1004 = vmatpush1.bf16.msra.mxu0 0
        %1005 = vmatprep.subr.bf16.mxu0 0
        %1006 = vmatpush1.bf16.msra.mxu0 0
        %1007 = vmatprep.subr.bf16.mxu0 0
        %1008 = vmatpush1.bf16.msra.mxu0 0
        %1009 = vmatprep.subr.bf16.mxu0 0
        %1010 = vmatpush1.bf16.msra.mxu0 0
        %1011 = vmatprep.subr.bf16.mxu0 0
        %1012 = vmatpush1.bf16.msra.mxu0 0
        %1013 = vmatprep.subr.bf16.mxu0 0
        %1014 = vmatpush1.bf16.msra.mxu0 0
        %1015 = vmatprep.mubr.bf16.mxu0 0
        %1016 = vmatmul.mubr.bf16.gmra.mrb[0].mxu0 %v938
        %v1017 = vpop.f32.mrb[0].mxu0
        %v1018 = vadd.f32 0.0, %v1017
        %v1019 = vpop.f32.mrb[0].mxu0
        %v1020 = vpop.f32.mrb[0].mxu0
        %v1021 = vadd.f32 0.0, %v1020
        %v1022 = vpop.f32.mrb[0].mxu0
        %1023 = vdwg.mxu0
        %v1024 = vadd.f32 %v908, %v975
        %v1025 = vadd.f32 %v909, %v977
        %v1026 = vadd.f32 %v910, %v1018
        %v1027 = vadd.f32 %v911, %v979
        %v1028 = vadd.f32 %v912, %v981
        %v1029 = vadd.f32 %v913, %v1021
        %s1030 = scalar_lea.vmem [#allocation5], 48
        %v1031 = vld [vmem:[%s1030] sm:$0xf]
        %v1032 = vld [vmem:[%s1030 + $0x4] sm:$0xf]
        %v1035 = vunpack.c.l.b16 %v1031
        %v1036 = vunpack.c.l.b16 %v1032
        %v1037 = vpack.c.b16 %v1036, %v1035
        %1038 = vrot.lane.b32.xlu0 %v364, 92
        %v1039 = vpop.permute.xlu0 %1038
        %1040 = vrot.lane.b32.xlu0 %v365, 92
        %v1041 = vpop.permute.xlu0 %1040
        %1042 = vrot.lane.b32.xlu0 %v366, 92
        %v1043 = vpop.permute.xlu0 %1042
        %1044 = vrot.lane.b32.xlu0 %v367, 92
        %v1045 = vpop.permute.xlu0 %1044
        %vm1046 = vcmask 752640
        %v1047 = vsel %vm1046, %v1039, %v1041
        %v1048 = vsel %vm1046, %v1041, %v1043
        %v1049 = vsel %vm1046, %v1043, %v1045
        %v1054 = vsel %vm383, %v1037, 0
        %1056 = vmatprep.subr.bf16.mxu0 %v1048
        %1057 = vmatpush1.bf16.msra.mxu0 %v1047
        %1058 = vmatprep.subr.bf16.mxu0 0
        %1059 = vmatpush1.bf16.msra.mxu0 0
        %1060 = vmatprep.subr.bf16.mxu0 0
        %1061 = vmatpush1.bf16.msra.mxu0 0
        %1062 = vmatprep.subr.bf16.mxu0 0
        %1063 = vmatpush1.bf16.msra.mxu0 0
        %1064 = vmatprep.subr.bf16.mxu0 0
        %1065 = vmatpush1.bf16.msra.mxu0 0
        %1066 = vmatprep.subr.bf16.mxu0 0
        %1067 = vmatpush1.bf16.msra.mxu0 0
        %1068 = vmatprep.subr.bf16.mxu0 0
        %1069 = vmatpush1.bf16.msra.mxu0 0
        %1070 = vmatprep.subr.bf16.mxu0 0
        %1071 = vmatpush1.bf16.msra.mxu0 0
        %1072 = vmatprep.subr.bf16.mxu0 0
        %1073 = vmatpush1.bf16.msra.mxu0 0
        %1074 = vmatprep.subr.bf16.mxu0 0
        %1075 = vmatpush1.bf16.msra.mxu0 0
        %1076 = vmatprep.subr.bf16.mxu0 0
        %1077 = vmatpush1.bf16.msra.mxu0 0
        %1078 = vmatprep.subr.bf16.mxu0 0
        %1079 = vmatpush1.bf16.msra.mxu0 0
        %1080 = vmatprep.subr.bf16.mxu0 0
        %1081 = vmatpush1.bf16.msra.mxu0 0
        %1082 = vmatprep.subr.bf16.mxu0 0
        %1083 = vmatpush1.bf16.msra.mxu0 0
        %1084 = vmatprep.subr.bf16.mxu0 0
        %1085 = vmatpush1.bf16.msra.mxu0 0
        %1086 = vmatprep.subr.bf16.mxu0 0
        %1087 = vmatpush1.bf16.msra.mxu0 0
        %1088 = vmatprep.mubr.bf16.mxu0 0
        %1089 = vmatmul.mubr.bf16.gmra.mrb[0].mxu0 %v1054
        %v1090 = vpop.f32.mrb[0].mxu0
        %v1091 = vadd.f32 0.0, %v1090
        %v1092 = vpop.f32.mrb[0].mxu0
        %v1093 = vadd.f32 0.0, %v1092
        %v1094 = vpop.f32.mrb[0].mxu0
        %v1095 = vadd.f32 0.0, %v1094
        %v1096 = vpop.f32.mrb[0].mxu0
        %v1097 = vadd.f32 0.0, %v1096
        %1098 = vdwg.mxu0
        %1099 = vmatprep.subr.bf16.mxu0 0
        %1100 = vmatpush1.bf16.msra.mxu0 %v1049
        %1101 = vmatprep.subr.bf16.mxu0 0
        %1102 = vmatpush1.bf16.msra.mxu0 0
        %1103 = vmatprep.subr.bf16.mxu0 0
        %1104 = vmatpush1.bf16.msra.mxu0 0
        %1105 = vmatprep.subr.bf16.mxu0 0
        %1106 = vmatpush1.bf16.msra.mxu0 0
        %1107 = vmatprep.subr.bf16.mxu0 0
        %1108 = vmatpush1.bf16.msra.mxu0 0
        %1109 = vmatprep.subr.bf16.mxu0 0
        %1110 = vmatpush1.bf16.msra.mxu0 0
        %1111 = vmatprep.subr.bf16.mxu0 0
        %1112 = vmatpush1.bf16.msra.mxu0 0
        %1113 = vmatprep.subr.bf16.mxu0 0
        %1114 = vmatpush1.bf16.msra.mxu0 0
        %1115 = vmatprep.subr.bf16.mxu0 0
        %1116 = vmatpush1.bf16.msra.mxu0 0
        %1117 = vmatprep.subr.bf16.mxu0 0
        %1118 = vmatpush1.bf16.msra.mxu0 0
        %1119 = vmatprep.subr.bf16.mxu0 0
        %1120 = vmatpush1.bf16.msra.mxu0 0
        %1121 = vmatprep.subr.bf16.mxu0 0
        %1122 = vmatpush1.bf16.msra.mxu0 0
        %1123 = vmatprep.subr.bf16.mxu0 0
        %1124 = vmatpush1.bf16.msra.mxu0 0
        %1125 = vmatprep.subr.bf16.mxu0 0
        %1126 = vmatpush1.bf16.msra.mxu0 0
        %1127 = vmatprep.subr.bf16.mxu0 0
        %1128 = vmatpush1.bf16.msra.mxu0 0
        %1129 = vmatprep.subr.bf16.mxu0 0
        %1130 = vmatpush1.bf16.msra.mxu0 0
        %1131 = vmatprep.mubr.bf16.mxu0 0
        %1132 = vmatmul.mubr.bf16.gmra.mrb[0].mxu0 %v1054
        %v1133 = vpop.f32.mrb[0].mxu0
        %v1134 = vadd.f32 0.0, %v1133
        %v1135 = vpop.f32.mrb[0].mxu0
        %v1136 = vpop.f32.mrb[0].mxu0
        %v1137 = vadd.f32 0.0, %v1136
        %v1138 = vpop.f32.mrb[0].mxu0
        %1139 = vdwg.mxu0
        %v1140 = vadd.f32 %v1024, %v1091
        %v1141 = vadd.f32 %v1025, %v1093
        %v1142 = vadd.f32 %v1026, %v1134
        %v1143 = vadd.f32 %v1027, %v1095
        %v1144 = vadd.f32 %v1028, %v1097
        %v1145 = vadd.f32 %v1029, %v1137
        %s1146 = scalar_lea.vmem [#allocation5], 56
        %v1147 = vld [vmem:[%s1146] sm:$0xf]
        %v1148 = vld [vmem:[%s1146 + $0x4] sm:$0xf]
        %v1151 = vunpack.c.l.b16 %v1147
        %v1152 = vunpack.c.l.b16 %v1148
        %v1153 = vpack.c.b16 %v1152, %v1151
        %1154 = vrot.lane.b32.xlu0 %v364, 91
        %v1155 = vpop.permute.xlu0 %1154
        %1156 = vrot.lane.b32.xlu0 %v365, 91
        %v1157 = vpop.permute.xlu0 %1156
        %1158 = vrot.lane.b32.xlu0 %v366, 91
        %v1159 = vpop.permute.xlu0 %1158
        %1160 = vrot.lane.b32.xlu0 %v367, 91
        %v1161 = vpop.permute.xlu0 %1160
        %vm1162 = vcmask 744448
        %v1163 = vsel %vm1162, %v1155, %v1157
        %v1164 = vsel %vm1162, %v1157, %v1159
        %v1165 = vsel %vm1162, %v1159, %v1161
        %v1170 = vsel %vm383, %v1153, 0
        %1172 = vmatprep.subr.bf16.mxu0 %v1164
        %1173 = vmatpush1.bf16.msra.mxu0 %v1163
        %1174 = vmatprep.subr.bf16.mxu0 0
        %1175 = vmatpush1.bf16.msra.mxu0 0
        %1176 = vmatprep.subr.bf16.mxu0 0
        %1177 = vmatpush1.bf16.msra.mxu0 0
        %1178 = vmatprep.subr.bf16.mxu0 0
        %1179 = vmatpush1.bf16.msra.mxu0 0
        %1180 = vmatprep.subr.bf16.mxu0 0
        %1181 = vmatpush1.bf16.msra.mxu0 0
        %1182 = vmatprep.subr.bf16.mxu0 0
        %1183 = vmatpush1.bf16.msra.mxu0 0
        %1184 = vmatprep.subr.bf16.mxu0 0
        %1185 = vmatpush1.bf16.msra.mxu0 0
        %1186 = vmatprep.subr.bf16.mxu0 0
        %1187 = vmatpush1.bf16.msra.mxu0 0
        %1188 = vmatprep.subr.bf16.mxu0 0
        %1189 = vmatpush1.bf16.msra.mxu0 0
        %1190 = vmatprep.subr.bf16.mxu0 0
        %1191 = vmatpush1.bf16.msra.mxu0 0
        %1192 = vmatprep.subr.bf16.mxu0 0
        %1193 = vmatpush1.bf16.msra.mxu0 0
        %1194 = vmatprep.subr.bf16.mxu0 0
        %1195 = vmatpush1.bf16.msra.mxu0 0
        %1196 = vmatprep.subr.bf16.mxu0 0
        %1197 = vmatpush1.bf16.msra.mxu0 0
        %1198 = vmatprep.subr.bf16.mxu0 0
        %1199 = vmatpush1.bf16.msra.mxu0 0
        %1200 = vmatprep.subr.bf16.mxu0 0
        %1201 = vmatpush1.bf16.msra.mxu0 0
        %1202 = vmatprep.subr.bf16.mxu0 0
        %1203 = vmatpush1.bf16.msra.mxu0 0
        %1204 = vmatprep.mubr.bf16.mxu0 0
        %1205 = vmatmul.mubr.bf16.gmra.mrb[0].mxu0 %v1170
        %v1206 = vpop.f32.mrb[0].mxu0
        %v1207 = vadd.f32 0.0, %v1206
        %v1208 = vpop.f32.mrb[0].mxu0
        %v1209 = vadd.f32 0.0, %v1208
        %v1210 = vpop.f32.mrb[0].mxu0
        %v1211 = vadd.f32 0.0, %v1210
        %v1212 = vpop.f32.mrb[0].mxu0
        %v1213 = vadd.f32 0.0, %v1212
        %1214 = vdwg.mxu0
        %1215 = vmatprep.subr.bf16.mxu0 0
        %1216 = vmatpush1.bf16.msra.mxu0 %v1165
        %1217 = vmatprep.subr.bf16.mxu0 0
        %1218 = vmatpush1.bf16.msra.mxu0 0
        %1219 = vmatprep.subr.bf16.mxu0 0
        %1220 = vmatpush1.bf16.msra.mxu0 0
        %1221 = vmatprep.subr.bf16.mxu0 0
        %1222 = vmatpush1.bf16.msra.mxu0 0
        %1223 = vmatprep.subr.bf16.mxu0 0
        %1224 = vmatpush1.bf16.msra.mxu0 0
        %1225 = vmatprep.subr.bf16.mxu0 0
        %1226 = vmatpush1.bf16.msra.mxu0 0
        %1227 = vmatprep.subr.bf16.mxu0 0
        %1228 = vmatpush1.bf16.msra.mxu0 0
        %1229 = vmatprep.subr.bf16.mxu0 0
        %1230 = vmatpush1.bf16.msra.mxu0 0
        %1231 = vmatprep.subr.bf16.mxu0 0
        %1232 = vmatpush1.bf16.msra.mxu0 0
        %1233 = vmatprep.subr.bf16.mxu0 0
        %1234 = vmatpush1.bf16.msra.mxu0 0
        %1235 = vmatprep.subr.bf16.mxu0 0
        %1236 = vmatpush1.bf16.msra.mxu0 0
        %1237 = vmatprep.subr.bf16.mxu0 0
        %1238 = vmatpush1.bf16.msra.mxu0 0
        %1239 = vmatprep.subr.bf16.mxu0 0
        %1240 = vmatpush1.bf16.msra.mxu0 0
        %1241 = vmatprep.subr.bf16.mxu0 0
        %1242 = vmatpush1.bf16.msra.mxu0 0
        %1243 = vmatprep.subr.bf16.mxu0 0
        %1244 = vmatpush1.bf16.msra.mxu0 0
        %1245 = vmatprep.subr.bf16.mxu0 0
        %1246 = vmatpush1.bf16.msra.mxu0 0
        %1247 = vmatprep.mubr.bf16.mxu0 0
        %1248 = vmatmul.mubr.bf16.gmra.mrb[0].mxu0 %v1170
        %v1249 = vpop.f32.mrb[0].mxu0
        %v1250 = vadd.f32 0.0, %v1249
        %v1251 = vpop.f32.mrb[0].mxu0
        %v1252 = vpop.f32.mrb[0].mxu0
        %v1253 = vadd.f32 0.0, %v1252
        %v1254 = vpop.f32.mrb[0].mxu0
        %1255 = vdwg.mxu0
        %v1256 = vadd.f32 %v1140, %v1207
        %v1257 = vadd.f32 %v1141, %v1209
        %v1258 = vadd.f32 %v1142, %v1250
        %v1259 = vadd.f32 %v1143, %v1211
        %v1260 = vadd.f32 %v1144, %v1213
        %v1261 = vadd.f32 %v1145, %v1253
        %s1262 = scalar_lea.vmem [#allocation5], 64
        %v1263 = vld [vmem:[%s1262] sm:$0xf]
        %v1264 = vld [vmem:[%s1262 + $0x4] sm:$0xf]
        %v1267 = vunpack.c.l.b16 %v1263
        %v1268 = vunpack.c.l.b16 %v1264
        %v1269 = vpack.c.b16 %v1268, %v1267
        %1270 = vrot.lane.b32.xlu0 %v364, 90
        %v1271 = vpop.permute.xlu0 %1270
        %1272 = vrot.lane.b32.xlu0 %v365, 90
        %v1273 = vpop.permute.xlu0 %1272
        %1274 = vrot.lane.b32.xlu0 %v366, 90
        %v1275 = vpop.permute.xlu0 %1274
        %1276 = vrot.lane.b32.xlu0 %v367, 90
        %v1277 = vpop.permute.xlu0 %1276
        %vm1278 = vcmask 736256
        %v1279 = vsel %vm1278, %v1271, %v1273
        %v1280 = vsel %vm1278, %v1273, %v1275
        %v1281 = vsel %vm1278, %v1275, %v1277
        %v1286 = vsel %vm383, %v1269, 0
        %1288 = vmatprep.subr.bf16.mxu0 %v1280
        %1289 = vmatpush1.bf16.msra.mxu0 %v1279
        %1290 = vmatprep.subr.bf16.mxu0 0
        %1291 = vmatpush1.bf16.msra.mxu0 0
        %1292 = vmatprep.subr.bf16.mxu0 0
        %1293 = vmatpush1.bf16.msra.mxu0 0
        %1294 = vmatprep.subr.bf16.mxu0 0
        %1295 = vmatpush1.bf16.msra.mxu0 0
        %1296 = vmatprep.subr.bf16.mxu0 0
        %1297 = vmatpush1.bf16.msra.mxu0 0
        %1298 = vmatprep.subr.bf16.mxu0 0
        %1299 = vmatpush1.bf16.msra.mxu0 0
        %1300 = vmatprep.subr.bf16.mxu0 0
        %1301 = vmatpush1.bf16.msra.mxu0 0
        %1302 = vmatprep.subr.bf16.mxu0 0
        %1303 = vmatpush1.bf16.msra.mxu0 0
        %1304 = vmatprep.subr.bf16.mxu0 0
        %1305 = vmatpush1.bf16.msra.mxu0 0
        %1306 = vmatprep.subr.bf16.mxu0 0
        %1307 = vmatpush1.bf16.msra.mxu0 0
        %1308 = vmatprep.subr.bf16.mxu0 0
        %1309 = vmatpush1.bf16.msra.mxu0 0
        %1310 = vmatprep.subr.bf16.mxu0 0
        %1311 = vmatpush1.bf16.msra.mxu0 0
        %1312 = vmatprep.subr.bf16.mxu0 0
        %1313 = vmatpush1.bf16.msra.mxu0 0
        %1314 = vmatprep.subr.bf16.mxu0 0
        %1315 = vmatpush1.bf16.msra.mxu0 0
        %1316 = vmatprep.subr.bf16.mxu0 0
        %1317 = vmatpush1.bf16.msra.mxu0 0
        %1318 = vmatprep.subr.bf16.mxu0 0
        %1319 = vmatpush1.bf16.msra.mxu0 0
        %1320 = vmatprep.mubr.bf16.mxu0 0
        %1321 = vmatmul.mubr.bf16.gmra.mrb[0].mxu0 %v1286
        %v1322 = vpop.f32.mrb[0].mxu0
        %v1323 = vadd.f32 0.0, %v1322
        %v1324 = vpop.f32.mrb[0].mxu0
        %v1325 = vadd.f32 0.0, %v1324
        %v1326 = vpop.f32.mrb[0].mxu0
        %v1327 = vadd.f32 0.0, %v1326
        %v1328 = vpop.f32.mrb[0].mxu0
        %v1329 = vadd.f32 0.0, %v1328
        %1330 = vdwg.mxu0
        %1331 = vmatprep.subr.bf16.mxu0 0
        %1332 = vmatpush1.bf16.msra.mxu0 %v1281
        %1333 = vmatprep.subr.bf16.mxu0 0
        %1334 = vmatpush1.bf16.msra.mxu0 0
        %1335 = vmatprep.subr.bf16.mxu0 0
        %1336 = vmatpush1.bf16.msra.mxu0 0
        %1337 = vmatprep.subr.bf16.mxu0 0
        %1338 = vmatpush1.bf16.msra.mxu0 0
        %1339 = vmatprep.subr.bf16.mxu0 0
        %1340 = vmatpush1.bf16.msra.mxu0 0
        %1341 = vmatprep.subr.bf16.mxu0 0
        %1342 = vmatpush1.bf16.msra.mxu0 0
        %1343 = vmatprep.subr.bf16.mxu0 0
        %1344 = vmatpush1.bf16.msra.mxu0 0
        %1345 = vmatprep.subr.bf16.mxu0 0
        %1346 = vmatpush1.bf16.msra.mxu0 0
        %1347 = vmatprep.subr.bf16.mxu0 0
        %1348 = vmatpush1.bf16.msra.mxu0 0
        %1349 = vmatprep.subr.bf16.mxu0 0
        %1350 = vmatpush1.bf16.msra.mxu0 0
        %1351 = vmatprep.subr.bf16.mxu0 0
        %1352 = vmatpush1.bf16.msra.mxu0 0
        %1353 = vmatprep.subr.bf16.mxu0 0
        %1354 = vmatpush1.bf16.msra.mxu0 0
        %1355 = vmatprep.subr.bf16.mxu0 0
        %1356 = vmatpush1.bf16.msra.mxu0 0
        %1357 = vmatprep.subr.bf16.mxu0 0
        %1358 = vmatpush1.bf16.msra.mxu0 0
        %1359 = vmatprep.subr.bf16.mxu0 0
        %1360 = vmatpush1.bf16.msra.mxu0 0
        %1361 = vmatprep.subr.bf16.mxu0 0
        %1362 = vmatpush1.bf16.msra.mxu0 0
        %1363 = vmatprep.mubr.bf16.mxu0 0
        %1364 = vmatmul.mubr.bf16.gmra.mrb[0].mxu0 %v1286
        %v1365 = vpop.f32.mrb[0].mxu0
        %v1366 = vadd.f32 0.0, %v1365
        %v1367 = vpop.f32.mrb[0].mxu0
        %v1368 = vpop.f32.mrb[0].mxu0
        %v1369 = vadd.f32 0.0, %v1368
        %v1370 = vpop.f32.mrb[0].mxu0
        %1371 = vdwg.mxu0
        %v1372 = vadd.f32 %v1256, %v1323
        %v1373 = vadd.f32 %v1257, %v1325
        %v1374 = vadd.f32 %v1258, %v1366
        %v1375 = vadd.f32 %v1259, %v1327
        %v1376 = vadd.f32 %v1260, %v1329
        %v1377 = vadd.f32 %v1261, %v1369
        %v1378 = vpack.c.bf16 %v1375, %v1372
        %v1379 = vpack.c.bf16 %v1376, %v1373
        %v1380 = vpack.c.bf16 %v1377, %v1374
        %v1384 = vunpack.c.l.b16 %v1378
        %v1385 = vunpack.c.l.b16 %v1379
        %v1386 = vunpack.c.l.b16 %v1380
        %v1387 = vunpack.c.h.b16 %v1378
        %v1388 = vunpack.c.h.b16 %v1379
        %v1389 = vunpack.c.h.b16 %v1380
        %v1390 = vpack.c.b16 %v1385, %v1384
        %v1391 = vpack.c.b16 %v1386, %v1386
        %v1392 = vpack.c.b16 %v1388, %v1387
        %v1393 = vpack.c.b16 %v1389, %v1389
        %1398 = vst [vmem:[%s290] sm:$0xff] %v1390
        %1399 = vst [vmem:[%s290 + $0x8] sm:$0xf] %v1391
        %1400 = vst [vmem:[%s290 + $0xc] sm:$0xff] %v1392
        %1401 = vst [vmem:[%s290 + $0x14] sm:$0xf] %v1393
        %v1402 = vld [vmem:[%s316] sm:$0x7]
        %v1404 = vlaneseq
        %v1405 = vshrl.u32 %v1404, 7
        %v1406 = vsub.s32 0, %v1405
        %v1407 = vrot.slane %v1402, %v1406
        %v1408 = vlaneseq
        %v1409 = vshrl.u32 %v1408, 7
        %v1410 = vsub.s32 1, %v1409
        %v1411 = vrot.slane %v1402, %v1410
        %v1412 = vlaneseq
        %v1413 = vshrl.u32 %v1412, 7
        %v1414 = vsub.s32 2, %v1413
        %v1415 = vrot.slane %v1402, %v1414
        %v1419 = vmul.f32 %v1372, %v1407
        %v1420 = vmul.f32 %v1373, %v1411
        %v1421 = vmul.f32 %v1374, %v1415
        %v1422 = vmul.f32 %v1375, %v1407
        %v1423 = vmul.f32 %v1376, %v1411
        %v1424 = vmul.f32 %v1377, %v1415
        %v1425 = vadd.f32 %v1419, %v1420
        %v1426 = vadd.f32 %v1425, %v1421
        %1427 = vadd.xlane.f32.xlu0 %v1426
        %v1428 = vpop.xlane.xlu0 %1427
        %v1429 = vadd.f32 %v1422, %v1423
        %v1430 = vadd.f32 %v1429, %v1424
        %1431 = vadd.xlane.f32.xlu0 %v1430
        %v1432 = vpop.xlane.xlu0 %1431
        %vm1433 = vcmask 7168
        %1434 = vst.msk [vmem:[%s327] sm:$0xff] %vm1433, %v1428
        %1435 = vst.msk [vmem:[%s327 + $0x8] sm:$0xff] %vm1433, %v1432
        %v1436 = vmul.f32 %v1419, %v1419
        %v1437 = vmul.f32 %v1420, %v1420
        %v1438 = vmul.f32 %v1421, %v1421
        %v1439 = vmul.f32 %v1422, %v1422
        %v1440 = vmul.f32 %v1423, %v1423
        %v1441 = vmul.f32 %v1424, %v1424
        %v1442 = vadd.f32 %v1436, %v1437
        %v1443 = vadd.f32 %v1442, %v1438
        %1444 = vadd.xlane.f32.xlu0 %v1443
        %v1445 = vpop.xlane.xlu0 %1444
        %v1446 = vadd.f32 %v1439, %v1440
        %v1447 = vadd.f32 %v1446, %v1441
        %1448 = vadd.xlane.f32.xlu0 %v1447
        %v1449 = vpop.xlane.xlu0 %1448
        %1450 = vst.msk [vmem:[%s336] sm:$0xff] %vm1433, %v1445
        %1451 = vst.msk [vmem:[%s336 + $0x8] sm:$0xff] %vm1433, %v1449
        %s1452 = sand.u32 %s119, 1
        %s1453 = scalar_lea.sflag [#allocation4], %s1452
        %s1454 = sand.u32 %s119, 1
        %s1455 = smul.addr %s1454, 24
        %s1456 = scalar_lea.vmem [#allocation7], %s1455
        %p1457 = scmp.lt.s32.totalorder %s28, 1
        %s1458 = scalar_select %p1457, %s28, 1
        %p1459 = scmp.lt.s32.totalorder %s29, 0
        %s1460 = scalar_select %p1459, %s29, 0
        %s1461 = smul.addr %s1460, 2
        %s1462 = smul.addr %s1458, 2
        %s1463 = sadd.s32 %s1461, %s1462
        %s1464 = smul.addr %s1463, 8
        %s1465 = scalar_lea.vmem %s4, %s1464
        %p1466 = scmp.lt.s32.totalorder %s28, 1
        %s1467 = scalar_select %p1466, %s28, 1
        %p1468 = scmp.lt.s32.totalorder %s29, 0
        %s1469 = scalar_select %p1468, %s29, 0
        %s1470 = smul.addr %s1469, 2
        %s1471 = smul.addr %s1467, 2
        %s1472 = sadd.s32 %s1470, %s1471
        %s1473 = smul.addr %s1472, 8
        %s1474 = scalar_lea.vmem %s5, %s1473
        // Predicated region
        $region41: #{tpu_custom_call.1} parent=31 // pred_check
          %p1475 = pneg %p129
        $region42: #{tpu_custom_call.1} parent=31 // pred_check_branch
          %1477 = sbr.rel (%p1475) target = $region44
        $region43: #{tpu_custom_call.1} parent=31 // pred_region
          %s1478 = smul.u32 3, %s29
          %s1480 = ssub.s32 384, 384
          %1481 = vsyncadd %s1453, %s1480
          %s1482 = smul.addr %s28, 6
          %s1483 = sadd.s32 %s1478, %s1482
          %s1484 = smul.addr %s1483, 64
          %s1485 = scalar_lea.hbm %s3, %s1484
          %s1486 = sshll.u32 %s1456, 4
          %s1487 = int_to_ptr.vmem [resolvable:$true] %s1486
          %1492 = dma.vmem_to_hbm [thread:$0]  %s1487, 384, %s1485, %s1453, 192, 192, 12
        $region44: #{tpu_custom_call.1} parent=31 // pred_fallthru
          _
        // Predicated region
        $region45: #{tpu_custom_call.1} parent=31 // pred_check
          %p1493 = pneg %p157
        $region46: #{tpu_custom_call.1} parent=31 // pred_check_branch
          %1495 = sbr.rel (%p1493) target = $region48
        $region47: #{tpu_custom_call.1} parent=31 // pred_region
          _
        $region48: #{tpu_custom_call.1} parent=31 // pred_fallthru
          _
        // Predicated region
        $region49: #{tpu_custom_call.1} parent=31 // pred_check
          %p1496 = pneg %p185
        $region50: #{tpu_custom_call.1} parent=31 // pred_check_branch
          %1498 = sbr.rel (%p1496) target = $region52
        $region51: #{tpu_custom_call.1} parent=31 // pred_region
          _
        $region52: #{tpu_custom_call.1} parent=31 // pred_fallthru
          _
      $region32: #{tpu_custom_call.1} parent=5 // pred_fallthru
        _
      %p1499 = scmp.le.s32.totalorder 2, %s19
      // Predicated region
      $region53: #{tpu_custom_call.1} parent=5 // pred_check
        %p1500 = pneg %p1499
      $region54: #{tpu_custom_call.1} parent=5 // pred_check_branch
        %1502 = sbr.rel (%p1500) target = $region56
      $region55: #{tpu_custom_call.1} parent=5 // pred_region
        %s1503 = ssub.s32 %s19, 2
        // Predicated region
        $region57: #{tpu_custom_call.1} parent=55 // pred_check
          %p1504 = pneg %p135
        $region58: #{tpu_custom_call.1} parent=55 // pred_check_branch
          %1506 = sbr.rel (%p1504) target = $region60
        $region59: #{tpu_custom_call.1} parent=55 // pred_region
          %s1507 = sand.u32 %s120, 1
          %s1508 = scalar_lea.sflag [#allocation4], %s1507
          %s1509 = sand.u32 %s120, 1
          %s1510 = smul.addr %s1509, 24
          %s1511 = scalar_lea.vmem [#allocation7], %s1510
          %1512 = dma.done %s1508, 384
        $region60: #{tpu_custom_call.1} parent=55 // pred_fallthru
          _
        // Predicated region
        $region61: #{tpu_custom_call.1} parent=55 // pred_check
          %p1513 = pneg %p163
        $region62: #{tpu_custom_call.1} parent=55 // pred_check_branch
          %1515 = sbr.rel (%p1513) target = $region64
        $region63: #{tpu_custom_call.1} parent=55 // pred_region
          %p1516 = scmp.lt.s32.totalorder %s30, 1
          %s1517 = scalar_select %p1516, %s30, 1
          %p1518 = scmp.lt.s32.totalorder %s31, 0
          %s1519 = scalar_select %p1518, %s31, 0
          %s1520 = smul.addr %s1519, 2
          %s1521 = smul.addr %s1517, 2
          %s1522 = sadd.s32 %s1520, %s1521
          %s1523 = smul.addr %s1522, 8
          %s1524 = scalar_lea.vmem %s4, %s1523
        $region64: #{tpu_custom_call.1} parent=55 // pred_fallthru
          _
        // Predicated region
        $region65: #{tpu_custom_call.1} parent=55 // pred_check
          %p1525 = pneg %p191
        $region66: #{tpu_custom_call.1} parent=55 // pred_check_branch
          %1527 = sbr.rel (%p1525) target = $region68
        $region67: #{tpu_custom_call.1} parent=55 // pred_region
          %p1528 = scmp.lt.s32.totalorder %s30, 1
          %s1529 = scalar_select %p1528, %s30, 1
          %p1530 = scmp.lt.s32.totalorder %s31, 0
          %s1531 = scalar_select %p1530, %s31, 0
          %s1532 = smul.addr %s1531, 2
          %s1533 = smul.addr %s1529, 2
          %s1534 = sadd.s32 %s1532, %s1533
          %s1535 = smul.addr %s1534, 8
          %s1536 = scalar_lea.vmem %s5, %s1535
        $region68: #{tpu_custom_call.1} parent=55 // pred_fallthru
          _
      $region56: #{tpu_custom_call.1} parent=5 // pred_fallthru
        _
    $region6: #{tpu_custom_call.1} parent=1 // loop_footer
      %s23 = sadd.s32 1, %s19
    $region7: #{tpu_custom_call.1} parent=1 // loop_footer_branch
      %18 = sbr.rel target = $region3
    $region8: #{tpu_custom_call.1} parent=1 // loop_exit
      _
    %1537 = vsyncpa [#allocation3], 1
    %s1538 = scalar_lea.sflag [#allocation3], 1
    %1539 = vsyncpa %s1538, 1
    %1540 = vsyncpa [#allocation6], 1
    %1541 = vsyncpa [#allocation4], 1
    %s1542 = scalar_lea.sflag [#allocation4], 1
    %1543 = vsyncpa %s1542, 1

</llo_original>
